<compile_context>
chip_gen: v7x
topology: tpu7x:2x2x1
jax: 0.10.0
libtpu: 0.0.40
codegen_flags: <defaults>
</compile_context>

<pallas_src>
import functools

import jax
import jax.numpy as jnp
from jax.experimental import pallas as pl
from jax.experimental.pallas import tpu as pltpu

# Module hyperparameters (SegmentLoss defaults)
NUM_CLASSES = 10
THRESHOLD = 0.95
UNLABEL_WEIGHT = 1.0
TEMPERATURE = 1.0
SMOOTH = 0.0          # DiceLoss smooth
FOCAL_ALPHA = 0.25    # torchvision sigmoid_focal_loss defaults
FOCAL_GAMMA = 2.0

# Row layout of the per-(split, n) partial (8, 128) output block.
_ROW_FOCAL, _ROW_INTER, _ROW_UNION, _ROW_KL, _ROW_MASK = 0, 1, 2, 3, 4


def _segment_loss_kernel(x_ref, t_ref, s_ref, w_ref, out_ref,
                         inter_acc, union_acc, focal_acc, kl_acc, mask_acc,
                         *, inv_threshold, inv_temperature, alpha, gamma,
                         hw, tile, n_h_per_split, needs_mask, num_classes):
    h = pl.program_id(2)
    last_h = pl.num_programs(2) - 1

    @pl.when(h == 0)
    def _init():
        inter_acc[...] = jnp.zeros_like(inter_acc)
        union_acc[...] = jnp.zeros_like(union_acc)
        focal_acc[...] = jnp.zeros_like(focal_acc)
        kl_acc[...] = jnp.zeros_like(kl_acc)
        mask_acc[...] = jnp.zeros_like(mask_acc)

    x = x_ref[...].astype(jnp.float32)   # (1, C, T) logits
    t = t_ref[...].astype(jnp.float32)   # (1, C, T) target (bf16 DMA -> f32)

    if needs_mask:                       # ragged last tile: mask padded lanes
        c_split = pl.program_id(0)
        start = (c_split * n_h_per_split + h) * tile
        lane = jax.lax.broadcasted_iota(jnp.int32, (1, 1, tile), 2)
        valid = (lane + start < hw).astype(jnp.float32)   # (1, 1, T)
    else:
        valid = None

    # ---- sigmoid focal loss (sigmoid via EUP tanh; exp(-|x|) only for log1p)
    u = jnp.exp(-jnp.abs(x))
    p = 0.5 + 0.5 * jnp.tanh(0.5 * x)                      # sigmoid(x), no divide
    ce = jnp.maximum(x, 0.0) - x * t + jnp.log1p(u)        # BCE-with-logits
    p_t = p * t + (1.0 - p) * (1.0 - t)
    one_m = 1.0 - p_t
    if gamma == 2.0:                                       # static branch
        mod = one_m * one_m
    elif gamma == 1.0:
        mod = one_m
    elif gamma == 0.0:
        mod = jnp.ones_like(one_m)
    else:
        mod = jnp.power(one_m, gamma)
    focal = ce * mod
    if alpha >= 0.0:
        focal = (alpha * t + (1.0 - alpha) * (1.0 - t)) * focal
    if needs_mask:
        focal = focal * valid
    focal_acc[...] += jnp.sum(focal, axis=2)               # (1, C) partial

    # ---- softmax over the class axis; dice / mIoU per-class partial sums
    m = jnp.max(x, axis=1, keepdims=True)                  # (1, 1, T)
    e = jnp.exp(x - m)
    inv_den = pl.reciprocal(jnp.sum(e, axis=1, keepdims=True), approx=True)
    prob = e * inv_den                                     # softmax(x, axis=1)
    pt_ = prob * t
    pu_ = prob + t
    if needs_mask:
        pt_ = pt_ * valid
        pu_ = pu_ * valid
    inter_acc[...] += jnp.sum(pt_, axis=2)                 # (1, C)
    union_acc[...] += jnp.sum(pu_, axis=2)                 # (1, C)

    # ---- masked, temperature-scaled KL distillation partial sums
    w = w_ref[...].astype(jnp.float32)
    s = s_ref[...].astype(jnp.float32)
    if inv_temperature != 1.0:
        w = w * inv_temperature
        s = s * inv_temperature

    wm = jnp.max(w, axis=1, keepdims=True)
    e_w = jnp.exp(w - wm)
    den_w = jnp.sum(e_w, axis=1, keepdims=True)
    w_log = (w - wm) - jnp.log(den_w)                      # log_softmax(weak/T)

    sm = jnp.max(s, axis=1, keepdims=True)
    e_s = jnp.exp(s - sm)
    s_log = (s - sm) - jnp.log(jnp.sum(e_s, axis=1, keepdims=True))

    # mask: max_C softmax(weak/T) = 1/den_w > thr  <=>  den_w < 1/thr (exact)
    mask = (den_w < inv_threshold).astype(jnp.float32)     # (1, 1, T)
    pseudo = e_w * pl.reciprocal(den_w, approx=True)       # exp(w_log)
    kl_c = jnp.sum(pseudo * (w_log - s_log), axis=1, keepdims=True)  # reduce C
    klm = kl_c * mask
    if needs_mask:
        klm = klm * valid
        mask = mask * valid
    kl_acc[...] += klm                                     # full-lane vreg add
    mask_acc[...] += mask                                  # full-lane vreg add

    # ---- finalize per-(split, n) partial results on the last HW tile
    @pl.when(h == last_h)
    def _finalize():
        focal_sum = jnp.sum(focal_acc[...])
        kl_sum = jnp.sum(kl_acc[...])
        mask_sum = jnp.sum(mask_acc[...])
        row = jax.lax.broadcasted_iota(jnp.int32, (1, 1, 8, 128), 2)
        block = jnp.where(row == _ROW_FOCAL, focal_sum, 0.0)
        block = jnp.where(row == _ROW_KL, kl_sum, block)
        block = jnp.where(row == _ROW_MASK, mask_sum, block)
        out_ref[...] = block
        # per-class inter/union partials (dice/miou finalized on the host so
        # the HW split across TensorCores stays correct)
        out_ref[:, :, _ROW_INTER, 0:num_classes] = (
            inter_acc[...].reshape(1, 1, num_classes))
        out_ref[:, :, _ROW_UNION, 0:num_classes] = (
            union_acc[...].reshape(1, 1, num_classes))


def _tpu_vmem_bytes():
    try:
        return int(pltpu.get_tpu_info().vmem_capacity_bytes)
    except Exception:
        return 64 * 1024 * 1024   # conservative (v7x-sized) fallback


def _select_tiling(vmem_bytes):
    """(max HW tile, scoped vmem limit) per generation, from physical VMEM."""
    if vmem_bytes >= 100 * 1024 * 1024:       # v5e / v6e: 128 MiB VMEM
        return 32768, 64 * 1024 * 1024
    return 8192, 32 * 1024 * 1024             # v7x: 64 MiB VMEM


def _choose_hw_tile(hw, max_tile):
    """Lane-tile selection: exact multiple-of-128 divisor if one exists,
    otherwise a bounded tile with an in-kernel-masked ragged remainder."""
    hw128 = ((hw + 127) // 128) * 128
    if hw128 <= max_tile:
        return hw128
    cand = (max_tile // 128) * 128
    while cand >= 128:
        if hw % cand == 0:
            return cand
        cand -= 128
    return (max_tile // 128) * 128            # ragged last tile, masked


def segment_loss(inputs, target, strong_pred, weak_pred,
                 threshold=THRESHOLD, unlabel_weight=UNLABEL_WEIGHT,
                 temperature=TEMPERATURE):
    """inputs/target/strong_pred/weak_pred: (N, C, H, W), NCHW like PyTorch.

    strong_pred/weak_pred are DMA'd in their caller dtype; on HBM-bound v5e,
    pass them as bf16 for ~2x less prediction traffic (verify loss tolerance).
    """
    N, C, H, W = inputs.shape
    assert C <= 128, "per-class partials are packed into one 128-lane row"
    HW = H * W

    max_tile, vmem_limit = _select_tiling(_tpu_vmem_bytes())
    tile = _choose_hw_tile(HW, max_tile)
    hw_pad = ((HW + tile - 1) // tile) * tile
    needs_mask = hw_pad != HW
    n_h = hw_pad // tile
    # Split the HW reduction across a leading parallel axis so both v7x
    # TensorCores stay busy even for N == 1 / odd N (harmless on 1-TC chips).
    n_split = 2 if (n_h >= 2 and n_h % 2 == 0) else 1
    n_h_per_split = n_h // n_split

    def to3(a, dtype=None):
        a = a.reshape(N, C, HW)
        if dtype is not None:
            a = a.astype(dtype)
        if needs_mask:
            a = jnp.pad(a, ((0, 0), (0, 0), (0, hw_pad - HW)))
        return a

    kern = functools.partial(
        _segment_loss_kernel,
        inv_threshold=float(1.0 / threshold),
        inv_temperature=float(1.0 / temperature),
        alpha=FOCAL_ALPHA, gamma=FOCAL_GAMMA,
        hw=HW, tile=tile, n_h_per_split=n_h_per_split,
        needs_mask=needs_mask, num_classes=C)

    hw_map = lambda c, n, h: (n, 0, c * n_h_per_split + h)
    in_spec = lambda: pl.BlockSpec((1, C, tile), hw_map)

    partial_out = pl.pallas_call(
        kern,
        out_shape=jax.ShapeDtypeStruct((n_split, N, 8, 128), jnp.float32),
        grid_spec=pltpu.PrefetchScalarGridSpec(
            num_scalar_prefetch=0,
            grid=(n_split, N, n_h_per_split),
            in_specs=[in_spec() for _ in range(4)],
            out_specs=pl.BlockSpec((1, 1, 8, 128), lambda c, n, h: (c, n, 0, 0)),
            scratch_shapes=[pltpu.VMEM((1, C), jnp.float32),        # inter
                            pltpu.VMEM((1, C), jnp.float32),        # union(dice)
                            pltpu.VMEM((1, C), jnp.float32),        # focal/class
                            pltpu.VMEM((1, 1, tile), jnp.float32),  # masked KL
                            pltpu.VMEM((1, 1, tile), jnp.float32)]),# mask count
        compiler_params=pltpu.CompilerParams(
            dimension_semantics=("parallel", "parallel", "arbitrary"),
            vmem_limit_bytes=vmem_limit),
    )(to3(inputs),
      # target is 0/1 one-hot -> ship at half width (bf16 is exact for 0/1)
      to3(target, jnp.bfloat16),
      to3(strong_pred), to3(weak_pred))

    po = partial_out
    focal_sum = jnp.sum(po[:, :, _ROW_FOCAL, 0])
    inter = jnp.sum(po[:, :, _ROW_INTER, :C], axis=0)      # (N, C)
    union_d = jnp.sum(po[:, :, _ROW_UNION, :C], axis=0)    # (N, C)
    kl_sum = jnp.sum(po[:, :, _ROW_KL, 0])
    mask_sum = jnp.sum(po[:, :, _ROW_MASK, 0])

    union_i = union_d - inter                              # prob + t - prob*t sums
    catego_loss = focal_sum / jnp.float32(N * C * HW)
    dice_loss = jnp.mean(1.0 - (2.0 * inter + SMOOTH)
                         / jnp.maximum(union_d + SMOOTH, 1e-8))
    miou_loss = jnp.mean(1.0 - inter / (union_i + 1e-8))
    dis_loss = jnp.where(
        mask_sum > 0.0,
        kl_sum * jnp.float32(temperature * temperature)
        / jnp.maximum(mask_sum, 1.0),
        0.0)
    total_loss = catego_loss + dice_loss + miou_loss + unlabel_weight * dis_loss
    return {
        "catego_loss": catego_loss,
        "miou_loss": miou_loss,
        "dice_loss": dice_loss,
        "dis_loss": dis_loss,
        "total_loss": total_loss,
    }


def _reference(inputs, target, strong_pred, weak_pred,
               threshold=THRESHOLD, unlabel_weight=UNLABEL_WEIGHT,
               temperature=TEMPERATURE):
    """Pure-JAX reference (mirrors the PyTorch module) for a sanity check."""
    x = inputs.astype(jnp.float32)
    t = target.astype(jnp.float32)
    N, C = x.shape[0], x.shape[1]

    p = jax.nn.sigmoid(x)
    ce = jnp.maximum(x, 0.0) - x * t + jnp.log1p(jnp.exp(-jnp.abs(x)))
    p_t = p * t + (1 - p) * (1 - t)
    focal = (FOCAL_ALPHA * t + (1 - FOCAL_ALPHA) * (1 - t)) * ce * (1 - p_t) ** 2
    catego = jnp.mean(focal)

    prob = jax.nn.softmax(x, axis=1)
    inter = (prob * t).reshape(N, C, -1).sum(2)
    union_d = (prob + t).reshape(N, C, -1).sum(2)
    union_i = (prob + t - prob * t).reshape(N, C, -1).sum(2)
    dice = jnp.mean(1 - (2 * inter + SMOOTH) / jnp.maximum(union_d + SMOOTH, 1e-8))
    miou = jnp.mean(1 - inter / (union_i + 1e-8))

    w_log = jax.nn.log_softmax(weak_pred.astype(jnp.float32) / temperature, axis=1)
    s_log = jax.nn.log_softmax(strong_pred.astype(jnp.float32) / temperature, axis=1)
    mask = (jnp.exp(w_log).max(axis=1) > threshold).astype(jnp.float32)
    kl = jnp.exp(w_log) * (w_log - s_log)
    msum = mask.sum()
    dis = jnp.where(msum > 0,
                    (kl * mask[:, None] * temperature ** 2).sum() / jnp.maximum(msum, 1.0),
                    0.0)
    total = catego + dice + miou + unlabel_weight * dis
    return {"catego_loss": catego, "miou_loss": miou, "dice_loss": dice,
            "dis_loss": dis, "total_loss": total}


if __name__ == "__main__":
    key = jax.random.PRNGKey(0)
    k1, k2, k3, k4 = jax.random.split(key, 4)

    N, C, H, W = 2, NUM_CLASSES, 16, 16
    inputs = jax.random.normal(k1, (N, C, H, W), dtype=jnp.float32)
    labels = jax.random.randint(k2, (N, H, W), 0, C)
    target = jax.nn.one_hot(labels, C, axis=1).astype(jnp.float32)   # (N, C, H, W)
    strong_pred = jax.random.normal(k3, (N, C, H, W), dtype=jnp.float32)
    # make weak predictions fairly confident so the mask path is exercised
    weak_pred = 5.0 * jax.random.normal(k4, (N, C, H, W), dtype=jnp.float32)

    out = segment_loss(inputs, target, strong_pred, weak_pred)
    out = jax.tree_util.tree_map(jax.block_until_ready, out)

    ref = _reference(inputs, target, strong_pred, weak_pred)
    # rtol loosened vs. the previous version: pl.reciprocal(approx=True)
    # (~2^-12 relative error) is used for the softmax / pseudo denominators.
    for k in out:
        assert jnp.allclose(out[k], ref[k], rtol=2e-3, atol=1e-5), (k, out[k], ref[k])

    print("KERNEL_OK")
</pallas_src>

<mosaic_0001>
module attributes {stable_mosaic.version = 11 : i64} {
  func.func @_segment_loss_kernel(%arg0: i32, %arg1: i32, %arg2: i32, %arg3: memref<1x10x256xf32, #tpu.memory_space<vmem>>, %arg4: memref<1x10x256xbf16, #tpu.memory_space<vmem>>, %arg5: memref<1x10x256xf32, #tpu.memory_space<vmem>>, %arg6: memref<1x10x256xf32, #tpu.memory_space<vmem>>, %arg7: memref<1x1x8x128xf32, #tpu.memory_space<vmem>>, %arg8: memref<1x10xf32, #tpu.memory_space<vmem>>, %arg9: memref<1x10xf32, #tpu.memory_space<vmem>>, %arg10: memref<1x10xf32, #tpu.memory_space<vmem>>, %arg11: memref<1x1x256xf32, #tpu.memory_space<vmem>>, %arg12: memref<1x1x256xf32, #tpu.memory_space<vmem>>) attributes {dimension_semantics = [#tpu.dimension_semantics<parallel>, #tpu.dimension_semantics<parallel>, #tpu.dimension_semantics<arbitrary>], iteration_bounds = array<i64: 1, 2, 1>, scalar_prefetch = 0 : i64, scratch_operands = 5 : i64, tpu.core_type = #tpu.core_type<tc>, window_params = [{transform_indices = @transform_0, window_bounds = array<i64: 1, 10, 256>}, {transform_indices = @transform_1, window_bounds = array<i64: 1, 10, 256>}, {transform_indices = @transform_2, window_bounds = array<i64: 1, 10, 256>}, {transform_indices = @transform_3, window_bounds = array<i64: 1, 10, 256>}, {transform_indices = @transform_4, window_bounds = array<i64: 1, 1, 8, 128>}]} {
    %c0_i32 = arith.constant 0 : i32
    %0 = arith.cmpi eq, %arg2, %c0_i32 : i32
    %1 = arith.extui %0 : i1 to i32
    %c0_i32_0 = arith.constant 0 : i32
    %2 = arith.cmpi ne, %1, %c0_i32_0 : i32
    scf.if %2 {
      %cst_59 = arith.constant 0.000000e+00 : f32
      %113 = vector.broadcast %cst_59 : f32 to vector<1x10xf32>
      %c0_60 = arith.constant 0 : index
      %c0_61 = arith.constant 0 : index
      %114 = vector.load %arg8[%c0_60, %c0_61] : memref<1x10xf32, #tpu.memory_space<vmem>>, vector<1x10xf32>
      tpu.vector_store %arg8[%c0_60, %c0_61], %113 {strides = array<i32>} : memref<1x10xf32, #tpu.memory_space<vmem>>, vector<1x10xf32>,
      %cst_62 = arith.constant 0.000000e+00 : f32
      %115 = vector.broadcast %cst_62 : f32 to vector<1x10xf32>
      %c0_63 = arith.constant 0 : index
      %c0_64 = arith.constant 0 : index
      %116 = vector.load %arg9[%c0_63, %c0_64] : memref<1x10xf32, #tpu.memory_space<vmem>>, vector<1x10xf32>
      tpu.vector_store %arg9[%c0_63, %c0_64], %115 {strides = array<i32>} : memref<1x10xf32, #tpu.memory_space<vmem>>, vector<1x10xf32>,
      %cst_65 = arith.constant 0.000000e+00 : f32
      %117 = vector.broadcast %cst_65 : f32 to vector<1x10xf32>
      %c0_66 = arith.constant 0 : index
      %c0_67 = arith.constant 0 : index
      %118 = vector.load %arg10[%c0_66, %c0_67] : memref<1x10xf32, #tpu.memory_space<vmem>>, vector<1x10xf32>
      tpu.vector_store %arg10[%c0_66, %c0_67], %117 {strides = array<i32>} : memref<1x10xf32, #tpu.memory_space<vmem>>, vector<1x10xf32>,
      %cst_68 = arith.constant 0.000000e+00 : f32
      %119 = vector.broadcast %cst_68 : f32 to vector<1x1x256xf32>
      %c0_69 = arith.constant 0 : index
      %c0_70 = arith.constant 0 : index
      %c0_71 = arith.constant 0 : index
      %120 = vector.load %arg11[%c0_69, %c0_70, %c0_71] : memref<1x1x256xf32, #tpu.memory_space<vmem>>, vector<1x1x256xf32>
      tpu.vector_store %arg11[%c0_69, %c0_70, %c0_71], %119 {strides = array<i32>} : memref<1x1x256xf32, #tpu.memory_space<vmem>>, vector<1x1x256xf32>,
      %cst_72 = arith.constant 0.000000e+00 : f32
      %121 = vector.broadcast %cst_72 : f32 to vector<1x1x256xf32>
      %c0_73 = arith.constant 0 : index
      %c0_74 = arith.constant 0 : index
      %c0_75 = arith.constant 0 : index
      %122 = vector.load %arg12[%c0_73, %c0_74, %c0_75] : memref<1x1x256xf32, #tpu.memory_space<vmem>>, vector<1x1x256xf32>
      tpu.vector_store %arg12[%c0_73, %c0_74, %c0_75], %121 {strides = array<i32>} : memref<1x1x256xf32, #tpu.memory_space<vmem>>, vector<1x1x256xf32>,
    } else {
    }
    %c0 = arith.constant 0 : index
    %c0_1 = arith.constant 0 : index
    %c0_2 = arith.constant 0 : index
    %3 = vector.load %arg3[%c0, %c0_1, %c0_2] : memref<1x10x256xf32, #tpu.memory_space<vmem>>, vector<1x10x256xf32>
    %c0_3 = arith.constant 0 : index
    %c0_4 = arith.constant 0 : index
    %c0_5 = arith.constant 0 : index
    %4 = vector.load %arg4[%c0_3, %c0_4, %c0_5] : memref<1x10x256xbf16, #tpu.memory_space<vmem>>, vector<1x10x256xbf16>
    %5 = arith.extf %4 : vector<1x10x256xbf16> to vector<1x10x256xf32>
    %6 = math.absf %3 : vector<1x10x256xf32>
    %cst = arith.constant 0.000000e+00 : f32
    %7 = vector.broadcast %cst : f32 to vector<1x10x256xf32>
    %8 = arith.subf %7, %6 : vector<1x10x256xf32>
    %9 = math.exp %8 : vector<1x10x256xf32>
    %cst_6 = arith.constant 5.000000e-01 : f32
    %10 = vector.broadcast %cst_6 : f32 to vector<1x10x256xf32>
    %11 = arith.mulf %10, %3 : vector<1x10x256xf32>
    %12 = math.tanh %11 : vector<1x10x256xf32>
    %cst_7 = arith.constant 5.000000e-01 : f32
    %13 = vector.broadcast %cst_7 : f32 to vector<1x10x256xf32>
    %14 = arith.mulf %13, %12 : vector<1x10x256xf32>
    %cst_8 = arith.constant 5.000000e-01 : f32
    %15 = vector.broadcast %cst_8 : f32 to vector<1x10x256xf32>
    %16 = arith.addf %15, %14 : vector<1x10x256xf32>
    %cst_9 = arith.constant 0.000000e+00 : f32
    %17 = vector.broadcast %cst_9 : f32 to vector<1x10x256xf32>
    %18 = arith.maximumf %3, %17 : vector<1x10x256xf32>
    %19 = arith.mulf %3, %5 : vector<1x10x256xf32>
    %20 = arith.subf %18, %19 : vector<1x10x256xf32>
    %21 = math.log1p %9 : vector<1x10x256xf32>
    %22 = arith.addf %20, %21 : vector<1x10x256xf32>
    %23 = arith.mulf %16, %5 : vector<1x10x256xf32>
    %cst_10 = arith.constant 1.000000e+00 : f32
    %24 = vector.broadcast %cst_10 : f32 to vector<1x10x256xf32>
    %25 = arith.subf %24, %16 : vector<1x10x256xf32>
    %cst_11 = arith.constant 1.000000e+00 : f32
    %26 = vector.broadcast %cst_11 : f32 to vector<1x10x256xf32>
    %27 = arith.subf %26, %5 : vector<1x10x256xf32>
    %28 = arith.mulf %25, %27 : vector<1x10x256xf32>
    %29 = arith.addf %23, %28 : vector<1x10x256xf32>
    %cst_12 = arith.constant 1.000000e+00 : f32
    %30 = vector.broadcast %cst_12 : f32 to vector<1x10x256xf32>
    %31 = arith.subf %30, %29 : vector<1x10x256xf32>
    %32 = arith.mulf %31, %31 : vector<1x10x256xf32>
    %33 = arith.mulf %22, %32 : vector<1x10x256xf32>
    %cst_13 = arith.constant 2.500000e-01 : f32
    %34 = vector.broadcast %cst_13 : f32 to vector<1x10x256xf32>
    %35 = arith.mulf %34, %5 : vector<1x10x256xf32>
    %cst_14 = arith.constant 1.000000e+00 : f32
    %36 = vector.broadcast %cst_14 : f32 to vector<1x10x256xf32>
    %37 = arith.subf %36, %5 : vector<1x10x256xf32>
    %cst_15 = arith.constant 7.500000e-01 : f32
    %38 = vector.broadcast %cst_15 : f32 to vector<1x10x256xf32>
    %39 = arith.mulf %38, %37 : vector<1x10x256xf32>
    %40 = arith.addf %35, %39 : vector<1x10x256xf32>
    %41 = arith.mulf %40, %33 : vector<1x10x256xf32>
    %c0_16 = arith.constant 0 : index
    %c0_17 = arith.constant 0 : index
    %42 = vector.load %arg10[%c0_16, %c0_17] : memref<1x10xf32, #tpu.memory_space<vmem>>, vector<1x10xf32>
    %cst_18 = arith.constant dense<0.000000e+00> : vector<1x10xf32>
    %43 = vector.multi_reduction <add>, %41, %cst_18 [2] : vector<1x10x256xf32> to vector<1x10xf32>
    %44 = arith.addf %42, %43 : vector<1x10xf32>
    %c0_19 = arith.constant 0 : index
    %c0_20 = arith.constant 0 : index
    %45 = vector.load %arg10[%c0_19, %c0_20] : memref<1x10xf32, #tpu.memory_space<vmem>>, vector<1x10xf32>
    tpu.vector_store %arg10[%c0_19, %c0_20], %44 {strides = array<i32>} : memref<1x10xf32, #tpu.memory_space<vmem>>, vector<1x10xf32>,
    %cst_21 = arith.constant dense<0xFF800000> : vector<1x256xf32>
    %46 = vector.multi_reduction <maximumf>, %3, %cst_21 [1] : vector<1x10x256xf32> to vector<1x256xf32>
    %47 = vector.shape_cast %46 : vector<1x256xf32> to vector<1x1x256xf32>
    %48 = vector.broadcast %47 : vector<1x1x256xf32> to vector<1x10x256xf32>
    %49 = arith.subf %3, %48 : vector<1x10x256xf32>
    %50 = math.exp %49 : vector<1x10x256xf32>
    %cst_22 = arith.constant dense<0.000000e+00> : vector<1x256xf32>
    %51 = vector.multi_reduction <add>, %50, %cst_22 [1] : vector<1x10x256xf32> to vector<1x256xf32>
    %52 = vector.shape_cast %51 : vector<1x256xf32> to vector<1x1x256xf32>
    %53 = tpu.reciprocal %52 {approx = true} : vector<1x1x256xf32> -> vector<1x1x256xf32>
    %54 = vector.broadcast %53 : vector<1x1x256xf32> to vector<1x10x256xf32>
    %55 = arith.mulf %50, %54 : vector<1x10x256xf32>
    %56 = arith.mulf %55, %5 : vector<1x10x256xf32>
    %57 = arith.addf %55, %5 : vector<1x10x256xf32>
    %c0_23 = arith.constant 0 : index
    %c0_24 = arith.constant 0 : index
    %58 = vector.load %arg8[%c0_23, %c0_24] : memref<1x10xf32, #tpu.memory_space<vmem>>, vector<1x10xf32>
    %cst_25 = arith.constant dense<0.000000e+00> : vector<1x10xf32>
    %59 = vector.multi_reduction <add>, %56, %cst_25 [2] : vector<1x10x256xf32> to vector<1x10xf32>
    %60 = arith.addf %58, %59 : vector<1x10xf32>
    %c0_26 = arith.constant 0 : index
    %c0_27 = arith.constant 0 : index
    %61 = vector.load %arg8[%c0_26, %c0_27] : memref<1x10xf32, #tpu.memory_space<vmem>>, vector<1x10xf32>
    tpu.vector_store %arg8[%c0_26, %c0_27], %60 {strides = array<i32>} : memref<1x10xf32, #tpu.memory_space<vmem>>, vector<1x10xf32>,
    %c0_28 = arith.constant 0 : index
    %c0_29 = arith.constant 0 : index
    %62 = vector.load %arg9[%c0_28, %c0_29] : memref<1x10xf32, #tpu.memory_space<vmem>>, vector<1x10xf32>
    %cst_30 = arith.constant dense<0.000000e+00> : vector<1x10xf32>
    %63 = vector.multi_reduction <add>, %57, %cst_30 [2] : vector<1x10x256xf32> to vector<1x10xf32>
    %64 = arith.addf %62, %63 : vector<1x10xf32>
    %c0_31 = arith.constant 0 : index
    %c0_32 = arith.constant 0 : index
    %65 = vector.load %arg9[%c0_31, %c0_32] : memref<1x10xf32, #tpu.memory_space<vmem>>, vector<1x10xf32>
    tpu.vector_store %arg9[%c0_31, %c0_32], %64 {strides = array<i32>} : memref<1x10xf32, #tpu.memory_space<vmem>>, vector<1x10xf32>,
    %c0_33 = arith.constant 0 : index
    %c0_34 = arith.constant 0 : index
    %c0_35 = arith.constant 0 : index
    %66 = vector.load %arg6[%c0_33, %c0_34, %c0_35] : memref<1x10x256xf32, #tpu.memory_space<vmem>>, vector<1x10x256xf32>
    %c0_36 = arith.constant 0 : index
    %c0_37 = arith.constant 0 : index
    %c0_38 = arith.constant 0 : index
    %67 = vector.load %arg5[%c0_36, %c0_37, %c0_38] : memref<1x10x256xf32, #tpu.memory_space<vmem>>, vector<1x10x256xf32>
    %cst_39 = arith.constant dense<0xFF800000> : vector<1x256xf32>
    %68 = vector.multi_reduction <maximumf>, %66, %cst_39 [1] : vector<1x10x256xf32> to vector<1x256xf32>
    %69 = vector.shape_cast %68 : vector<1x256xf32> to vector<1x1x256xf32>
    %70 = vector.broadcast %69 : vector<1x1x256xf32> to vector<1x10x256xf32>
    %71 = arith.subf %66, %70 : vector<1x10x256xf32>
    %72 = math.exp %71 : vector<1x10x256xf32>
    %cst_40 = arith.constant dense<0.000000e+00> : vector<1x256xf32>
    %73 = vector.multi_reduction <add>, %72, %cst_40 [1] : vector<1x10x256xf32> to vector<1x256xf32>
    %74 = vector.shape_cast %73 : vector<1x256xf32> to vector<1x1x256xf32>
    %75 = vector.broadcast %69 : vector<1x1x256xf32> to vector<1x10x256xf32>
    %76 = arith.subf %66, %75 : vector<1x10x256xf32>
    %77 = math.log %74 : vector<1x1x256xf32>
    %78 = vector.broadcast %77 : vector<1x1x256xf32> to vector<1x10x256xf32>
    %79 = arith.subf %76, %78 : vector<1x10x256xf32>
    %cst_41 = arith.constant dense<0xFF800000> : vector<1x256xf32>
    %80 = vector.multi_reduction <maximumf>, %67, %cst_41 [1] : vector<1x10x256xf32> to vector<1x256xf32>
    %81 = vector.shape_cast %80 : vector<1x256xf32> to vector<1x1x256xf32>
    %82 = vector.broadcast %81 : vector<1x1x256xf32> to vector<1x10x256xf32>
    %83 = arith.subf %67, %82 : vector<1x10x256xf32>
    %84 = math.exp %83 : vector<1x10x256xf32>
    %85 = vector.broadcast %81 : vector<1x1x256xf32> to vector<1x10x256xf32>
    %86 = arith.subf %67, %85 : vector<1x10x256xf32>
    %cst_42 = arith.constant dense<0.000000e+00> : vector<1x256xf32>
    %87 = vector.multi_reduction <add>, %84, %cst_42 [1] : vector<1x10x256xf32> to vector<1x256xf32>
    %88 = vector.shape_cast %87 : vector<1x256xf32> to vector<1x1x256xf32>
    %89 = math.log %88 : vector<1x1x256xf32>
    %90 = vector.broadcast %89 : vector<1x1x256xf32> to vector<1x10x256xf32>
    %91 = arith.subf %86, %90 : vector<1x10x256xf32>
    %cst_43 = arith.constant 1.05263162 : f32
    %92 = vector.broadcast %cst_43 : f32 to vector<1x1x256xf32>
    %93 = arith.cmpf olt, %74, %92 : vector<1x1x256xf32>
    %94 = arith.extui %93 : vector<1x1x256xi1> to vector<1x1x256xi32>
    %95 = arith.sitofp %94 : vector<1x1x256xi32> to vector<1x1x256xf32>
    %96 = tpu.reciprocal %74 {approx = true} : vector<1x1x256xf32> -> vector<1x1x256xf32>
    %97 = vector.broadcast %96 : vector<1x1x256xf32> to vector<1x10x256xf32>
    %98 = arith.mulf %72, %97 : vector<1x10x256xf32>
    %99 = arith.subf %79, %91 : vector<1x10x256xf32>
    %100 = arith.mulf %98, %99 : vector<1x10x256xf32>
    %cst_44 = arith.constant dense<0.000000e+00> : vector<1x256xf32>
    %101 = vector.multi_reduction <add>, %100, %cst_44 [1] : vector<1x10x256xf32> to vector<1x256xf32>
    %102 = vector.shape_cast %101 : vector<1x256xf32> to vector<1x1x256xf32>
    %103 = arith.mulf %102, %95 : vector<1x1x256xf32>
    %c0_45 = arith.constant 0 : index
    %c0_46 = arith.constant 0 : index
    %c0_47 = arith.constant 0 : index
    %104 = vector.load %arg11[%c0_45, %c0_46, %c0_47] : memref<1x1x256xf32, #tpu.memory_space<vmem>>, vector<1x1x256xf32>
    %105 = arith.addf %104, %103 : vector<1x1x256xf32>
    %c0_48 = arith.constant 0 : index
    %c0_49 = arith.constant 0 : index
    %c0_50 = arith.constant 0 : index
    %106 = vector.load %arg11[%c0_48, %c0_49, %c0_50] : memref<1x1x256xf32, #tpu.memory_space<vmem>>, vector<1x1x256xf32>
    tpu.vector_store %arg11[%c0_48, %c0_49, %c0_50], %105 {strides = array<i32>} : memref<1x1x256xf32, #tpu.memory_space<vmem>>, vector<1x1x256xf32>,
    %c0_51 = arith.constant 0 : index
    %c0_52 = arith.constant 0 : index
    %c0_53 = arith.constant 0 : index
    %107 = vector.load %arg12[%c0_51, %c0_52, %c0_53] : memref<1x1x256xf32, #tpu.memory_space<vmem>>, vector<1x1x256xf32>
    %108 = arith.addf %107, %95 : vector<1x1x256xf32>
    %c0_54 = arith.constant 0 : index
    %c0_55 = arith.constant 0 : index
    %c0_56 = arith.constant 0 : index
    %109 = vector.load %arg12[%c0_54, %c0_55, %c0_56] : memref<1x1x256xf32, #tpu.memory_space<vmem>>, vector<1x1x256xf32>
    tpu.vector_store %arg12[%c0_54, %c0_55, %c0_56], %108 {strides = array<i32>} : memref<1x1x256xf32, #tpu.memory_space<vmem>>, vector<1x1x256xf32>,
    %c0_i32_57 = arith.constant 0 : i32
    %110 = arith.cmpi eq, %arg2, %c0_i32_57 : i32
    %111 = arith.extui %110 : i1 to i32
    %c0_i32_58 = arith.constant 0 : i32
    %112 = arith.cmpi ne, %111, %c0_i32_58 : i32
    scf.if %112 {
      %c0_59 = arith.constant 0 : index
      %c0_60 = arith.constant 0 : index
      %113 = vector.load %arg10[%c0_59, %c0_60] : memref<1x10xf32, #tpu.memory_space<vmem>>, vector<1x10xf32>
      %114 = vector.shape_cast %113 : vector<1x10xf32> to vector<1x1x10xf32>
      %cst_61 = arith.constant dense<0.000000e+00> : vector<1xf32>
      %115 = vector.multi_reduction <add>, %114, %cst_61 [1, 2] : vector<1x1x10xf32> to vector<1xf32>
      %116 = vector.shape_cast %115 : vector<1xf32> to vector<1x1x1xf32>
      %117 = vector.extract %116[0, 0, 0] : f32 from vector<1x1x1xf32>
      %c0_62 = arith.constant 0 : index
      %c0_63 = arith.constant 0 : index
      %c0_64 = arith.constant 0 : index
      %118 = vector.load %arg11[%c0_62, %c0_63, %c0_64] : memref<1x1x256xf32, #tpu.memory_space<vmem>>, vector<1x1x256xf32>
      %119 = vector.shape_cast %118 : vector<1x1x256xf32> to vector<1x1x1x256xf32>
      %cst_65 = arith.constant dense<0.000000e+00> : vector<1xf32>
      %120 = vector.multi_reduction <add>, %119, %cst_65 [1, 2, 3] : vector<1x1x1x256xf32> to vector<1xf32>
      %121 = vector.shape_cast %120 : vector<1xf32> to vector<1x1x1x1xf32>
      %122 = vector.extract %121[0, 0, 0, 0] : f32 from vector<1x1x1x1xf32>
      %c0_66 = arith.constant 0 : index
      %c0_67 = arith.constant 0 : index
      %c0_68 = arith.constant 0 : index
      %123 = vector.load %arg12[%c0_66, %c0_67, %c0_68] : memref<1x1x256xf32, #tpu.memory_space<vmem>>, vector<1x1x256xf32>
      %124 = vector.shape_cast %123 : vector<1x1x256xf32> to vector<1x1x1x256xf32>
      %cst_69 = arith.constant dense<0.000000e+00> : vector<1xf32>
      %125 = vector.multi_reduction <add>, %124, %cst_69 [1, 2, 3] : vector<1x1x1x256xf32> to vector<1xf32>
      %126 = vector.shape_cast %125 : vector<1xf32> to vector<1x1x1x1xf32>
      %127 = vector.extract %126[0, 0, 0, 0] : f32 from vector<1x1x1x1xf32>
      %128 = tpu.iota {dimensions = array<i32: 2>} : vector<1x1x8x128xi32>
      %c0_i32_70 = arith.constant 0 : i32
      %129 = vector.broadcast %c0_i32_70 : i32 to vector<1x1x8x128xi32>
      %130 = arith.cmpi eq, %128, %129 : vector<1x1x8x128xi32>
      %cst_71 = arith.constant 0.000000e+00 : f32
      %131 = vector.broadcast %117 : f32 to vector<1x1x8x128xf32>
      %132 = vector.broadcast %cst_71 : f32 to vector<1x1x8x128xf32>
      %133 = arith.select %130, %131, %132 : vector<1x1x8x128xi1>, vector<1x1x8x128xf32>
      %c3_i32 = arith.constant 3 : i32
      %134 = vector.broadcast %c3_i32 : i32 to vector<1x1x8x128xi32>
      %135 = arith.cmpi eq, %128, %134 : vector<1x1x8x128xi32>
      %136 = vector.broadcast %122 : f32 to vector<1x1x8x128xf32>
      %137 = arith.select %135, %136, %133 : vector<1x1x8x128xi1>, vector<1x1x8x128xf32>
      %c4_i32 = arith.constant 4 : i32
      %138 = vector.broadcast %c4_i32 : i32 to vector<1x1x8x128xi32>
      %139 = arith.cmpi eq, %128, %138 : vector<1x1x8x128xi32>
      %140 = vector.broadcast %127 : f32 to vector<1x1x8x128xf32>
      %141 = arith.select %139, %140, %137 : vector<1x1x8x128xi1>, vector<1x1x8x128xf32>
      %c0_72 = arith.constant 0 : index
      %c0_73 = arith.constant 0 : index
      %c0_74 = arith.constant 0 : index
      %c0_75 = arith.constant 0 : index
      %142 = vector.load %arg7[%c0_72, %c0_73, %c0_74, %c0_75] : memref<1x1x8x128xf32, #tpu.memory_space<vmem>>, vector<1x1x8x128xf32>
      tpu.vector_store %arg7[%c0_72, %c0_73, %c0_74, %c0_75], %141 {strides = array<i32>} : memref<1x1x8x128xf32, #tpu.memory_space<vmem>>, vector<1x1x8x128xf32>,
      %c0_76 = arith.constant 0 : index
      %c0_77 = arith.constant 0 : index
      %143 = vector.load %arg8[%c0_76, %c0_77] : memref<1x10xf32, #tpu.memory_space<vmem>>, vector<1x10xf32>
      %144 = vector.shape_cast %143 : vector<1x10xf32> to vector<1x1x10xf32>
      %c0_78 = arith.constant 0 : index
      %c0_79 = arith.constant 0 : index
      %c1 = arith.constant 1 : index
      %c0_80 = arith.constant 0 : index
      %145 = vector.load %arg7[%c0_78, %c0_79, %c1, %c0_80] : memref<1x1x8x128xf32, #tpu.memory_space<vmem>>, vector<1x1x1x10xf32>
      %146 = vector.shape_cast %145 : vector<1x1x1x10xf32> to vector<1x1x10xf32>
      %147 = vector.shape_cast %144 : vector<1x1x10xf32> to vector<1x1x1x10xf32>
      tpu.vector_store %arg7[%c0_78, %c0_79, %c1, %c0_80], %147 {strides = array<i32>} : memref<1x1x8x128xf32, #tpu.memory_space<vmem>>, vector<1x1x1x10xf32>,
      %c0_81 = arith.constant 0 : index
      %c0_82 = arith.constant 0 : index
      %148 = vector.load %arg9[%c0_81, %c0_82] : memref<1x10xf32, #tpu.memory_space<vmem>>, vector<1x10xf32>
      %149 = vector.shape_cast %148 : vector<1x10xf32> to vector<1x1x10xf32>
      %c0_83 = arith.constant 0 : index
      %c0_84 = arith.constant 0 : index
      %c2 = arith.constant 2 : index
      %c0_85 = arith.constant 0 : index
      %150 = vector.load %arg7[%c0_83, %c0_84, %c2, %c0_85] : memref<1x1x8x128xf32, #tpu.memory_space<vmem>>, vector<1x1x1x10xf32>
      %151 = vector.shape_cast %150 : vector<1x1x1x10xf32> to vector<1x1x10xf32>
      %152 = vector.shape_cast %149 : vector<1x1x10xf32> to vector<1x1x1x10xf32>
      tpu.vector_store %arg7[%c0_83, %c0_84, %c2, %c0_85], %152 {strides = array<i32>} : memref<1x1x8x128xf32, #tpu.memory_space<vmem>>, vector<1x1x1x10xf32>,
    } else {
    }
    return
  }
  func.func @transform_0(%arg0: i32, %arg1: i32, %arg2: i32) -> (i32, i32, i32) {
    %c1_i32 = arith.constant 1 : i32
    %0 = arith.muli %arg0, %c1_i32 : i32
    %1 = arith.addi %0, %arg2 : i32
    %c0_i32 = arith.constant 0 : i32
    %c0_i32_0 = arith.constant 0 : i32
    return %arg1, %c0_i32, %1 : i32, i32, i32
  }
  func.func @transform_1(%arg0: i32, %arg1: i32, %arg2: i32) -> (i32, i32, i32) {
    %c1_i32 = arith.constant 1 : i32
    %0 = arith.muli %arg0, %c1_i32 : i32
    %1 = arith.addi %0, %arg2 : i32
    %c0_i32 = arith.constant 0 : i32
    %c0_i32_0 = arith.constant 0 : i32
    return %arg1, %c0_i32, %1 : i32, i32, i32
  }
  func.func @transform_2(%arg0: i32, %arg1: i32, %arg2: i32) -> (i32, i32, i32) {
    %c1_i32 = arith.constant 1 : i32
    %0 = arith.muli %arg0, %c1_i32 : i32
    %1 = arith.addi %0, %arg2 : i32
    %c0_i32 = arith.constant 0 : i32
    %c0_i32_0 = arith.constant 0 : i32
    return %arg1, %c0_i32, %1 : i32, i32, i32
  }
  func.func @transform_3(%arg0: i32, %arg1: i32, %arg2: i32) -> (i32, i32, i32) {
    %c1_i32 = arith.constant 1 : i32
    %0 = arith.muli %arg0, %c1_i32 : i32
    %1 = arith.addi %0, %arg2 : i32
    %c0_i32 = arith.constant 0 : i32
    %c0_i32_0 = arith.constant 0 : i32
    return %arg1, %c0_i32, %1 : i32, i32, i32
  }
  func.func @transform_4(%arg0: i32, %arg1: i32, %arg2: i32) -> (i32, i32, i32, i32) {
    %c0_i32 = arith.constant 0 : i32
    %c0_i32_0 = arith.constant 0 : i32
    %c0_i32_1 = arith.constant 0 : i32
    return %arg0, %arg1, %c0_i32, %c0_i32_0 : i32, i32, i32, i32
  }
}

</mosaic_0001>

<llo_original>
// kernel: tpu_custom_call.1
$region0: #{tpu_custom_call.1}
  #allocation0 [shape = 'u32[]', space=smem, size = 0x4, offset = 0x4, fixed_abs, tag = 'smem constant byte address 0x4 - core index']
  #allocation1 [shape = 'u32[144,128]{1,0:T(1,128)}', space=vmem, size = 0x12000, scoped, tag = 'internal scratch']
  #allocation2 [shape = 'f32[1,10]{1,0:T(1,128)}', space=vmem, size = 0x200, scoped, tag = 'scratch operand']
  #allocation3 [shape = 'f32[1,10]{1,0:T(1,128)}', space=vmem, size = 0x200, scoped, tag = 'scratch operand']
  #allocation4 [shape = 'f32[1,10]{1,0:T(1,128)}', space=vmem, size = 0x200, scoped, tag = 'scratch operand']
  #allocation5 [shape = 'f32[1,1,256]{2,1,0:T(1,128)}', space=vmem, size = 0x400, scoped, tag = 'scratch operand']
  #allocation6 [shape = 'f32[1,1,256]{2,1,0:T(1,128)}', space=vmem, size = 0x400, scoped, tag = 'scratch operand']
  %s0 = inlined_call_operand.vmem [shape: f32[2,10,256], index: 0, kind: input, shape index: {}]
  %s1 = inlined_call_operand.vmem [shape: bf16[2,10,256], index: 1, kind: input, shape index: {}]
  %s2 = inlined_call_operand.vmem [shape: f32[2,10,256], index: 2, kind: input, shape index: {}]
  %s3 = inlined_call_operand.vmem [shape: f32[2,10,256], index: 3, kind: input, shape index: {}]
  %s4 = inlined_call_operand.hbm [shape: f32[1,2,8,128], index: 4, kind: output, shape index: {}]
  %s5 = sld [smem:[#allocation0]]
  $region57: #{tpu_custom_call.1} parent=0
    _
  %s7 = ssub.s32 1, %s5
  %s8 = scalar_select 0, %s7, %s5
  $region1: #{tpu_custom_call.1} parent=0
    #allocation7 [shape = 'u8[8192]{0}', space=vmem, size = 0x2000, scoped, tag = 'output window, operand 0']
    #allocation8 [shape = 's32[2]{0}', space=sflag, size = 0x8, scoped, tag = 'scoped memory for tpu_custom_call.1']
    %9 = vsyncpa [#allocation8], 0
    %s10 = scalar_lea.sflag [#allocation8], 1
    %11 = vsyncpa %s10, 0
    loop: start=0, step=1, limit=4
    $region2: #{tpu_custom_call.1} parent=1 // loop_pre_header
      _
    $region3: #{tpu_custom_call.1} parent=1 // loop_header
      %s13 = sphi 0, %s17
      %p14 = scmp.ge.s32.totalorder %s13, 4
      %s20 = sphi 0, %s39
      %s21 = sphi 0, %s35
      %s22 = sphi 0, %s31
      %s23 = sphi 0, %s20
      %s24 = sphi 0, %s21
      %s25 = sphi 0, %s22
      %s26 = sphi 0, %s23
      %s27 = sphi 0, %s24
      %s28 = sphi 0, %s25
      %s46 = sphi 0, %s48
      %s49 = sphi 0, %s46
      %s50 = sphi 0, %s49
      %s66 = sphi 0, %s50
      %s76 = sphi 0, %s78
      %s79 = sphi 0, %s76
      %s80 = sphi 0, %s79
      %s96 = sphi 0, %s80
      %s106 = sphi 0, %s108
      %s109 = sphi 0, %s106
      %s110 = sphi 0, %s109
      %s126 = sphi 0, %s110
      %s136 = sphi 0, %s138
      %s139 = sphi 0, %s136
      %s140 = sphi 0, %s139
      %s156 = sphi 0, %s140
      %s164 = sphi 0, %s166
      %s167 = sphi 0, %s164
      %s168 = sphi 0, %s167
      %s184 = sphi 0, %s168
    $region4: #{tpu_custom_call.1} parent=1 // loop_header_branch
      %16 = sbr.rel (%p14) target = $region8
    $region5: #{tpu_custom_call.1} parent=1 // loop_body
      %s18 = ssub.s32 %s13, 1
      %s19 = ssub.s32 %s13, 2
      %s29 = sadd.s32 1, %s22
      %p30 = scmp.ge.s32.totalorder %s29, 1
      %s31 = scalar_select %p30, 0, %s29
      %s32 = sadd.s32 1, %s21
      %s33 = scalar_select %p30, %s32, %s21
      %p34 = scmp.ge.s32.totalorder %s33, 2
      %s35 = scalar_select %p34, 0, %s33
      %s36 = sadd.s32 1, %s20
      %s37 = scalar_select %p34, %s36, %s20
      %p38 = scmp.ge.s32.totalorder %s37, 1
      %s39 = scalar_select %p38, 0, %s37
      %s40 = sadd.s32 %s20, %s22
      %s41 = sadd.s32 %s39, %s31
      %s42 = ssub.s32 %s21, %s35
      %s43 = ssub.s32 %s40, %s41
      %s44 = sor.u32 %s42, %s43
      %p45 = scmp.eq.s32.totalorder %s44, 0
      %s47 = sadd.s32 %s46, 1
      %s48 = scalar_select %p45, %s46, %s47
      %p51 = pneg %p45
      %p52 = scmp.eq.s32.totalorder %s13, 1
      %p53 = por %p51, %p52
      %p54 = scmp.ne.s32.totalorder %s46, %s49
      %p55 = scmp.eq.s32.totalorder %s13, 0
      %p56 = por %p54, %p55
      %p57 = scmp.ne.s32.totalorder %s46, %s49
      %p58 = scmp.eq.s32.totalorder %s18, 1
      %p59 = por %p57, %p58
      %p60 = scmp.ne.s32.totalorder %s49, %s50
      %p61 = scmp.eq.s32.totalorder %s18, 0
      %p62 = por %p60, %p61
      %p63 = scmp.ne.s32.totalorder %s49, %s50
      %p64 = scmp.eq.s32.totalorder %s19, 1
      %p65 = por %p63, %p64
      %p67 = scmp.ne.s32.totalorder %s50, %s66
      %p68 = scmp.eq.s32.totalorder %s19, 0
      %p69 = por %p67, %p68
      %s70 = sadd.s32 %s20, %s22
      %s71 = sadd.s32 %s39, %s31
      %s72 = ssub.s32 %s21, %s35
      %s73 = ssub.s32 %s70, %s71
      %s74 = sor.u32 %s72, %s73
      %p75 = scmp.eq.s32.totalorder %s74, 0
      %s77 = sadd.s32 %s76, 1
      %s78 = scalar_select %p75, %s76, %s77
      %p81 = pneg %p75
      %p82 = scmp.eq.s32.totalorder %s13, 1
      %p83 = por %p81, %p82
      %p84 = scmp.ne.s32.totalorder %s76, %s79
      %p85 = scmp.eq.s32.totalorder %s13, 0
      %p86 = por %p84, %p85
      %p87 = scmp.ne.s32.totalorder %s76, %s79
      %p88 = scmp.eq.s32.totalorder %s18, 1
      %p89 = por %p87, %p88
      %p90 = scmp.ne.s32.totalorder %s79, %s80
      %p91 = scmp.eq.s32.totalorder %s18, 0
      %p92 = por %p90, %p91
      %p93 = scmp.ne.s32.totalorder %s79, %s80
      %p94 = scmp.eq.s32.totalorder %s19, 1
      %p95 = por %p93, %p94
      %p97 = scmp.ne.s32.totalorder %s80, %s96
      %p98 = scmp.eq.s32.totalorder %s19, 0
      %p99 = por %p97, %p98
      %s100 = sadd.s32 %s20, %s22
      %s101 = sadd.s32 %s39, %s31
      %s102 = ssub.s32 %s21, %s35
      %s103 = ssub.s32 %s100, %s101
      %s104 = sor.u32 %s102, %s103
      %p105 = scmp.eq.s32.totalorder %s104, 0
      %s107 = sadd.s32 %s106, 1
      %s108 = scalar_select %p105, %s106, %s107
      %p111 = pneg %p105
      %p112 = scmp.eq.s32.totalorder %s13, 1
      %p113 = por %p111, %p112
      %p114 = scmp.ne.s32.totalorder %s106, %s109
      %p115 = scmp.eq.s32.totalorder %s13, 0
      %p116 = por %p114, %p115
      %p117 = scmp.ne.s32.totalorder %s106, %s109
      %p118 = scmp.eq.s32.totalorder %s18, 1
      %p119 = por %p117, %p118
      %p120 = scmp.ne.s32.totalorder %s109, %s110
      %p121 = scmp.eq.s32.totalorder %s18, 0
      %p122 = por %p120, %p121
      %p123 = scmp.ne.s32.totalorder %s109, %s110
      %p124 = scmp.eq.s32.totalorder %s19, 1
      %p125 = por %p123, %p124
      %p127 = scmp.ne.s32.totalorder %s110, %s126
      %p128 = scmp.eq.s32.totalorder %s19, 0
      %p129 = por %p127, %p128
      %s130 = sadd.s32 %s20, %s22
      %s131 = sadd.s32 %s39, %s31
      %s132 = ssub.s32 %s21, %s35
      %s133 = ssub.s32 %s130, %s131
      %s134 = sor.u32 %s132, %s133
      %p135 = scmp.eq.s32.totalorder %s134, 0
      %s137 = sadd.s32 %s136, 1
      %s138 = scalar_select %p135, %s136, %s137
      %p141 = pneg %p135
      %p142 = scmp.eq.s32.totalorder %s13, 1
      %p143 = por %p141, %p142
      %p144 = scmp.ne.s32.totalorder %s136, %s139
      %p145 = scmp.eq.s32.totalorder %s13, 0
      %p146 = por %p144, %p145
      %p147 = scmp.ne.s32.totalorder %s136, %s139
      %p148 = scmp.eq.s32.totalorder %s18, 1
      %p149 = por %p147, %p148
      %p150 = scmp.ne.s32.totalorder %s139, %s140
      %p151 = scmp.eq.s32.totalorder %s18, 0
      %p152 = por %p150, %p151
      %p153 = scmp.ne.s32.totalorder %s139, %s140
      %p154 = scmp.eq.s32.totalorder %s19, 1
      %p155 = por %p153, %p154
      %p157 = scmp.ne.s32.totalorder %s140, %s156
      %p158 = scmp.eq.s32.totalorder %s19, 0
      %p159 = por %p157, %p158
      %s160 = ssub.s32 %s20, %s39
      %s161 = ssub.s32 %s21, %s35
      %s162 = sor.u32 %s160, %s161
      %p163 = scmp.eq.s32.totalorder %s162, 0
      %s165 = sadd.s32 %s164, 1
      %s166 = scalar_select %p163, %s164, %s165
      %p169 = pneg %p163
      %p170 = scmp.eq.s32.totalorder %s13, 1
      %p171 = por %p169, %p170
      %p172 = scmp.ne.s32.totalorder %s164, %s167
      %p173 = scmp.eq.s32.totalorder %s13, 0
      %p174 = por %p172, %p173
      %p175 = scmp.ne.s32.totalorder %s164, %s167
      %p176 = scmp.eq.s32.totalorder %s18, 1
      %p177 = por %p175, %p176
      %p178 = scmp.ne.s32.totalorder %s167, %s168
      %p179 = scmp.eq.s32.totalorder %s18, 0
      %p180 = por %p178, %p179
      %p181 = scmp.ne.s32.totalorder %s167, %s168
      %p182 = scmp.eq.s32.totalorder %s19, 1
      %p183 = por %p181, %p182
      %p185 = scmp.ne.s32.totalorder %s168, %s184
      %p186 = scmp.eq.s32.totalorder %s19, 0
      %p187 = por %p185, %p186
      %p188 = scmp.le.s32.totalorder 1, %s13
      %p189 = scmp.lt.s32.totalorder %s13, 3
      %p190 = pnand %p188, %p189
      %p191 = pneg %p190
      // Predicated region
      $region9: #{tpu_custom_call.1} parent=5 // pred_check
        _
      $region10: #{tpu_custom_call.1} parent=5 // pred_check_branch
        %193 = sbr.rel (%p190) target = $region12
      $region11: #{tpu_custom_call.1} parent=5 // pred_region
        %s194 = ssub.s32 %s13, 1
      $region12: #{tpu_custom_call.1} parent=5 // pred_fallthru
        _
      %p195 = scmp.lt.s32.totalorder %s13, 2
      // Predicated region
      $region13: #{tpu_custom_call.1} parent=5 // pred_check
        %p196 = pneg %p195
      $region14: #{tpu_custom_call.1} parent=5 // pred_check_branch
        %198 = sbr.rel (%p196) target = $region16
      $region15: #{tpu_custom_call.1} parent=5 // pred_region
        // Predicated region
        $region17: #{tpu_custom_call.1} parent=15 // pred_check
          %p199 = pneg %p56
        $region18: #{tpu_custom_call.1} parent=15 // pred_check_branch
          %201 = sbr.rel (%p199) target = $region20
        $region19: #{tpu_custom_call.1} parent=15 // pred_region
          %s202 = sadd.s32 %s20, %s22
          %s203 = smul.u32 2, %s202
          %p204 = scmp.lt.s32.totalorder %s21, 1
          %s205 = scalar_select %p204, %s21, 1
          %p206 = scmp.lt.s32.totalorder %s203, 1
          %s207 = scalar_select %p206, %s203, 1
          %s208 = smul.addr %s205, 4
          %s209 = sadd.s32 %s207, %s208
          %s210 = smul.addr %s209, 8
          %s211 = scalar_lea.vmem %s0, %s210
          %s212 = sadd.s32 %s20, %s22
          %s213 = smul.u32 2, %s212
        $region20: #{tpu_custom_call.1} parent=15 // pred_fallthru
          _
        // Predicated region
        $region21: #{tpu_custom_call.1} parent=15 // pred_check
          %p214 = pneg %p86
        $region22: #{tpu_custom_call.1} parent=15 // pred_check_branch
          %216 = sbr.rel (%p214) target = $region24
        $region23: #{tpu_custom_call.1} parent=15 // pred_region
          %s217 = sadd.s32 %s20, %s22
          %s218 = smul.u32 2, %s217
          %p219 = scmp.lt.s32.totalorder %s21, 1
          %s220 = scalar_select %p219, %s21, 1
          %p221 = scmp.lt.s32.totalorder %s218, 1
          %s222 = scalar_select %p221, %s218, 1
          %s223 = smul.addr %s220, 4
          %s224 = sadd.s32 %s222, %s223
          %s225 = smul.addr %s224, 4
          %s226 = scalar_lea.vmem %s1, %s225
          %s227 = sadd.s32 %s20, %s22
          %s228 = smul.u32 2, %s227
        $region24: #{tpu_custom_call.1} parent=15 // pred_fallthru
          _
        // Predicated region
        $region25: #{tpu_custom_call.1} parent=15 // pred_check
          %p229 = pneg %p116
        $region26: #{tpu_custom_call.1} parent=15 // pred_check_branch
          %231 = sbr.rel (%p229) target = $region28
        $region27: #{tpu_custom_call.1} parent=15 // pred_region
          %s232 = sadd.s32 %s20, %s22
          %s233 = smul.u32 2, %s232
          %p234 = scmp.lt.s32.totalorder %s21, 1
          %s235 = scalar_select %p234, %s21, 1
          %p236 = scmp.lt.s32.totalorder %s233, 1
          %s237 = scalar_select %p236, %s233, 1
          %s238 = smul.addr %s235, 4
          %s239 = sadd.s32 %s237, %s238
          %s240 = smul.addr %s239, 8
          %s241 = scalar_lea.vmem %s2, %s240
          %s242 = sadd.s32 %s20, %s22
          %s243 = smul.u32 2, %s242
        $region28: #{tpu_custom_call.1} parent=15 // pred_fallthru
          _
        // Predicated region
        $region29: #{tpu_custom_call.1} parent=15 // pred_check
          %p244 = pneg %p146
        $region30: #{tpu_custom_call.1} parent=15 // pred_check_branch
          %246 = sbr.rel (%p244) target = $region32
        $region31: #{tpu_custom_call.1} parent=15 // pred_region
          %s247 = sadd.s32 %s20, %s22
          %s248 = smul.u32 2, %s247
          %p249 = scmp.lt.s32.totalorder %s21, 1
          %s250 = scalar_select %p249, %s21, 1
          %p251 = scmp.lt.s32.totalorder %s248, 1
          %s252 = scalar_select %p251, %s248, 1
          %s253 = smul.addr %s250, 4
          %s254 = sadd.s32 %s252, %s253
          %s255 = smul.addr %s254, 8
          %s256 = scalar_lea.vmem %s3, %s255
          %s257 = sadd.s32 %s20, %s22
          %s258 = smul.u32 2, %s257
        $region32: #{tpu_custom_call.1} parent=15 // pred_fallthru
          _
      $region16: #{tpu_custom_call.1} parent=5 // pred_fallthru
        _
      %p259 = scmp.le.s32.totalorder 1, %s13
      %p260 = scmp.lt.s32.totalorder %s13, 3
      %p261 = pnand %p259, %p260
      %p262 = pneg %p261
      // Predicated region
      $region33: #{tpu_custom_call.1} parent=5 // pred_check
        _
      $region34: #{tpu_custom_call.1} parent=5 // pred_check_branch
        %264 = sbr.rel (%p261) target = $region36
      $region35: #{tpu_custom_call.1} parent=5 // pred_region
        %s265 = ssub.s32 %s13, 1
        %s266 = sadd.s32 %s23, %s25
        %s267 = smul.u32 2, %s266
        %p268 = scmp.lt.s32.totalorder %s24, 1
        %s269 = scalar_select %p268, %s24, 1
        %p270 = scmp.lt.s32.totalorder %s267, 1
        %s271 = scalar_select %p270, %s267, 1
        %s272 = smul.addr %s269, 4
        %s273 = sadd.s32 %s271, %s272
        %s274 = smul.addr %s273, 8
        %s275 = scalar_lea.vmem %s0, %s274
        %p276 = pneg %p62
        %p277 = pneg %p59
        %s278 = sadd.s32 %s23, %s25
        %s279 = smul.u32 2, %s278
        %p280 = scmp.lt.s32.totalorder %s24, 1
        %s281 = scalar_select %p280, %s24, 1
        %p282 = scmp.lt.s32.totalorder %s279, 1
        %s283 = scalar_select %p282, %s279, 1
        %s284 = smul.addr %s281, 4
        %s285 = sadd.s32 %s283, %s284
        %s286 = smul.addr %s285, 4
        %s287 = scalar_lea.vmem %s1, %s286
        %p288 = pneg %p92
        %p289 = pneg %p89
        %s290 = sadd.s32 %s23, %s25
        %s291 = smul.u32 2, %s290
        %p292 = scmp.lt.s32.totalorder %s24, 1
        %s293 = scalar_select %p292, %s24, 1
        %p294 = scmp.lt.s32.totalorder %s291, 1
        %s295 = scalar_select %p294, %s291, 1
        %s296 = smul.addr %s293, 4
        %s297 = sadd.s32 %s295, %s296
        %s298 = smul.addr %s297, 8
        %s299 = scalar_lea.vmem %s2, %s298
        %p300 = pneg %p122
        %p301 = pneg %p119
        %s302 = sadd.s32 %s23, %s25
        %s303 = smul.u32 2, %s302
        %p304 = scmp.lt.s32.totalorder %s24, 1
        %s305 = scalar_select %p304, %s24, 1
        %p306 = scmp.lt.s32.totalorder %s303, 1
        %s307 = scalar_select %p306, %s303, 1
        %s308 = smul.addr %s305, 4
        %s309 = sadd.s32 %s307, %s308
        %s310 = smul.addr %s309, 8
        %s311 = scalar_lea.vmem %s3, %s310
        %p312 = pneg %p152
        %p313 = pneg %p149
        %p314 = pneg %p180
        %p315 = pneg %p177
        %s316 = sand.u32 %s167, 1
        %s317 = scalar_lea.sflag [#allocation8], %s316
        %s318 = sand.u32 %s167, 1
        %s319 = smul.addr %s318, 8
        %s320 = scalar_lea.vmem [#allocation7], %s319
        %s321 = sadd.s32 %s23, %s25
        %s322 = smul.u32 2, %s321
        %p323 = scmp.lt.s32.totalorder %s24, 1
        %s324 = scalar_select %p323, %s24, 1
        %p325 = scmp.lt.s32.totalorder %s322, 1
        %s326 = scalar_select %p325, %s322, 1
        %s327 = smul.addr %s324, 4
        %s328 = sadd.s32 %s326, %s327
        %s329 = smul.addr %s328, 8
        %s330 = scalar_lea.vmem %s0, %s329
        %s331 = sadd.s32 %s23, %s25
        %s332 = smul.u32 2, %s331
        %s333 = sadd.s32 %s23, %s25
        %s334 = smul.u32 2, %s333
        %p335 = scmp.lt.s32.totalorder %s24, 1
        %s336 = scalar_select %p335, %s24, 1
        %p337 = scmp.lt.s32.totalorder %s334, 1
        %s338 = scalar_select %p337, %s334, 1
        %s339 = smul.addr %s336, 4
        %s340 = sadd.s32 %s338, %s339
        %s341 = smul.addr %s340, 4
        %s342 = scalar_lea.vmem %s1, %s341
        %s343 = sadd.s32 %s23, %s25
        %s344 = smul.u32 2, %s343
        %s345 = sadd.s32 %s23, %s25
        %s346 = smul.u32 2, %s345
        %p347 = scmp.lt.s32.totalorder %s24, 1
        %s348 = scalar_select %p347, %s24, 1
        %p349 = scmp.lt.s32.totalorder %s346, 1
        %s350 = scalar_select %p349, %s346, 1
        %s351 = smul.addr %s348, 4
        %s352 = sadd.s32 %s350, %s351
        %s353 = smul.addr %s352, 8
        %s354 = scalar_lea.vmem %s2, %s353
        %s355 = sadd.s32 %s23, %s25
        %s356 = smul.u32 2, %s355
        %s357 = sadd.s32 %s23, %s25
        %s358 = smul.u32 2, %s357
        %p359 = scmp.lt.s32.totalorder %s24, 1
        %s360 = scalar_select %p359, %s24, 1
        %p361 = scmp.lt.s32.totalorder %s358, 1
        %s362 = scalar_select %p361, %s358, 1
        %s363 = smul.addr %s360, 4
        %s364 = sadd.s32 %s362, %s363
        %s365 = smul.addr %s364, 8
        %s366 = scalar_lea.vmem %s3, %s365
        %s367 = sadd.s32 %s23, %s25
        %s368 = smul.u32 2, %s367
        %p369 = scmp.eq.s32.totalorder %s25, 0
        // Predicated region
        $region37: #{tpu_custom_call.1} parent=35 // pred_check
          %p370 = pneg %p369
        $region38: #{tpu_custom_call.1} parent=35 // pred_check_branch
          %372 = sbr.rel (%p370) target = $region40
        $region39: #{tpu_custom_call.1} parent=35 // pred_region
          %vm373 = vcmask 73728
          %374 = vst.msk [vmem:[#allocation2] sm:$0x1] %vm373, 0.0
          %375 = vst.msk [vmem:[#allocation3] sm:$0x1] %vm373, 0.0
          %376 = vst.msk [vmem:[#allocation4] sm:$0x1] %vm373, 0.0
          %v377 = vlaneseq
          %vm378 = vcmp.ge.s32.totalorder %v377, 0
          %vm379 = vcmp.lt.s32.totalorder %v377, 256
          %vm380 = vmand %vm378, %vm379
          %381 = vst.msk [vmem:[#allocation5] sm:$0x3] %vm380, 0.0
          %382 = vst.msk [vmem:[#allocation6] sm:$0x3] %vm380, 0.0
        $region40: #{tpu_custom_call.1} parent=35 // pred_fallthru
          _
        %v383 = vld [vmem:[%s330] sm:$0xff]
        %v384 = vld [vmem:[%s330 + $0x8] sm:$0xff]
        %v385 = vld [vmem:[%s330 + $0x10] sm:$0x3]
        %v386 = vld [vmem:[%s330 + $0x18] sm:$0x3]
        %v387 = vld [vmem:[%s342] sm:$0xff]
        %v388 = vld [vmem:[%s342 + $0x8] sm:$0x11]
        %v389 = vunpack.c.l.bf16 %v387
        %v390 = vunpack.c.h.bf16 %v387
        %v391 = vunpack.c.l.bf16 %v388
        %v392 = vunpack.c.h.bf16 %v388
        %v393 = vand.u32 2147483647, %v383
        %v394 = vand.u32 2147483647, %v384
        %v395 = vand.u32 2147483647, %v385
        %v396 = vand.u32 2147483647, %v386
        %v397 = vsub.f32 0.0, %v393
        %v398 = vsub.f32 0.0, %v394
        %v399 = vsub.f32 0.0, %v395
        %v400 = vsub.f32 0.0, %v396
        %v401 = vmul.f32 %v397, 1.442695
        %v402 = vpow.pop %v401
        %v403 = vmul.f32 %v398, 1.442695
        %v404 = vpow.pop %v403
        %v405 = vmul.f32 %v399, 1.442695
        %v406 = vpow.pop %v405
        %v407 = vmul.f32 %v400, 1.442695
        %v408 = vpow.pop %v407
        %v409 = vmul.f32 %v383, 0.5
        %v410 = vmul.f32 %v384, 0.5
        %v411 = vmul.f32 %v385, 0.5
        %v412 = vmul.f32 %v386, 0.5
        %v413 = vtanh.pop %v409
        %v414 = vtanh.pop %v410
        %v415 = vtanh.pop %v411
        %v416 = vtanh.pop %v412
        %v417 = vmul.f32 %v413, 0.5
        %v418 = vmul.f32 %v414, 0.5
        %v419 = vmul.f32 %v415, 0.5
        %v420 = vmul.f32 %v416, 0.5
        %v421 = vadd.f32 %v417, 0.5
        %v422 = vadd.f32 %v418, 0.5
        %v423 = vadd.f32 %v419, 0.5
        %v424 = vadd.f32 %v420, 0.5
        %v425 = vmax.f32 %v383, 0.0
        %v426 = vmax.f32 %v384, 0.0
        %v427 = vmax.f32 %v385, 0.0
        %v428 = vmax.f32 %v386, 0.0
        %v429 = vmul.f32 %v383, %v389
        %v430 = vmul.f32 %v384, %v390
        %v431 = vmul.f32 %v385, %v391
        %v432 = vmul.f32 %v386, %v392
        %v433 = vsub.f32 %v425, %v429
        %v434 = vsub.f32 %v426, %v430
        %v435 = vsub.f32 %v427, %v431
        %v436 = vsub.f32 %v428, %v432
        %v437 = vadd.f32 %v402, 1.0
        %v438 = vlog2.pop %v437
        %v439 = vmul.f32 %v438, 0.6931472
        %v440 = vmul.f32 -0.5, %v402
        %v441 = vadd.f32 %v440, 1.0
        %v442 = vmul.f32 %v441, %v402
        %v443 = vand.u32 2147483647, %v402
        %vm444 = vcmp.lt.f32.partialorder %v443, 0.0004427343
        %v445 = vsel %vm444, %v442, %v439
        %v446 = vadd.f32 %v404, 1.0
        %v447 = vlog2.pop %v446
        %v448 = vmul.f32 %v447, 0.6931472
        %v449 = vmul.f32 -0.5, %v404
        %v450 = vadd.f32 %v449, 1.0
        %v451 = vmul.f32 %v450, %v404
        %v452 = vand.u32 2147483647, %v404
        %vm453 = vcmp.lt.f32.partialorder %v452, 0.0004427343
        %v454 = vsel %vm453, %v451, %v448
        %v455 = vadd.f32 %v406, 1.0
        %v456 = vlog2.pop %v455
        %v457 = vmul.f32 %v456, 0.6931472
        %v458 = vmul.f32 -0.5, %v406
        %v459 = vadd.f32 %v458, 1.0
        %v460 = vmul.f32 %v459, %v406
        %v461 = vand.u32 2147483647, %v406
        %vm462 = vcmp.lt.f32.partialorder %v461, 0.0004427343
        %v463 = vsel %vm462, %v460, %v457
        %v464 = vadd.f32 %v408, 1.0
        %v465 = vlog2.pop %v464
        %v466 = vmul.f32 %v465, 0.6931472
        %v467 = vmul.f32 -0.5, %v408
        %v468 = vadd.f32 %v467, 1.0
        %v469 = vmul.f32 %v468, %v408
        %v470 = vand.u32 2147483647, %v408
        %vm471 = vcmp.lt.f32.partialorder %v470, 0.0004427343
        %v472 = vsel %vm471, %v469, %v466
        %v473 = vadd.f32 %v433, %v445
        %v474 = vadd.f32 %v434, %v454
        %v475 = vadd.f32 %v435, %v463
        %v476 = vadd.f32 %v436, %v472
        %v477 = vmul.f32 %v421, %v389
        %v478 = vmul.f32 %v422, %v390
        %v479 = vmul.f32 %v423, %v391
        %v480 = vmul.f32 %v424, %v392
        %v481 = vsub.f32 1.0, %v421
        %v482 = vsub.f32 1.0, %v422
        %v483 = vsub.f32 1.0, %v423
        %v484 = vsub.f32 1.0, %v424
        %v485 = vsub.f32 1.0, %v389
        %v486 = vsub.f32 1.0, %v390
        %v487 = vsub.f32 1.0, %v391
        %v488 = vsub.f32 1.0, %v392
        %v489 = vmul.f32 %v481, %v485
        %v490 = vmul.f32 %v482, %v486
        %v491 = vmul.f32 %v483, %v487
        %v492 = vmul.f32 %v484, %v488
        %v493 = vadd.f32 %v477, %v489
        %v494 = vadd.f32 %v478, %v490
        %v495 = vadd.f32 %v479, %v491
        %v496 = vadd.f32 %v480, %v492
        %v497 = vsub.f32 1.0, %v493
        %v498 = vsub.f32 1.0, %v494
        %v499 = vsub.f32 1.0, %v495
        %v500 = vsub.f32 1.0, %v496
        %v501 = vmul.f32 %v497, %v497
        %v502 = vmul.f32 %v498, %v498
        %v503 = vmul.f32 %v499, %v499
        %v504 = vmul.f32 %v500, %v500
        %v505 = vmul.f32 %v473, %v501
        %v506 = vmul.f32 %v474, %v502
        %v507 = vmul.f32 %v475, %v503
        %v508 = vmul.f32 %v476, %v504
        %v509 = vmul.f32 %v389, 0.25
        %v510 = vmul.f32 %v390, 0.25
        %v511 = vmul.f32 %v391, 0.25
        %v512 = vmul.f32 %v392, 0.25
        %v513 = vmul.f32 %v485, 0.75
        %v514 = vmul.f32 %v486, 0.75
        %v515 = vmul.f32 %v487, 0.75
        %v516 = vmul.f32 %v488, 0.75
        %v517 = vadd.f32 %v509, %v513
        %v518 = vadd.f32 %v510, %v514
        %v519 = vadd.f32 %v511, %v515
        %v520 = vadd.f32 %v512, %v516
        %v521 = vmul.f32 %v517, %v505
        %v522 = vmul.f32 %v518, %v506
        %v523 = vmul.f32 %v519, %v507
        %v524 = vmul.f32 %v520, %v508
        %v525 = vld [vmem:[#allocation4] sm:$0x1]
        %v526 = vadd.f32 %v521, %v522
        %527 = vadd.xlane.f32.xlu0 %v526
        %v528 = vpop.xlane.xlu0 %527
        %vm529 = vcmask 1041408
        %v530 = vsel %vm529, %v523, 0.0
        %v531 = vsel %vm529, %v524, 0.0
        %v532 = vadd.f32 %v530, %v531
        %533 = vadd.xlane.f32.xlu0 %v532
        %v534 = vpop.xlane.xlu0 %533
        %v537 = vlaneseq
        %v538 = vshrl.u32 %v537, 7
        %v539 = vsub.s32 0, %v538
        %v540 = vrot.slane %v528, %v539
        %v541 = vlaneseq
        %v542 = vshrl.u32 %v541, 7
        %v543 = vsub.s32 1, %v542
        %v544 = vrot.slane %v528, %v543
        %v545 = vlaneseq
        %v546 = vshrl.u32 %v545, 7
        %v547 = vsub.s32 2, %v546
        %v548 = vrot.slane %v528, %v547
        %v549 = vlaneseq
        %v550 = vshrl.u32 %v549, 7
        %v551 = vsub.s32 3, %v550
        %v552 = vrot.slane %v528, %v551
        %v553 = vlaneseq
        %v554 = vshrl.u32 %v553, 7
        %v555 = vsub.s32 4, %v554
        %v556 = vrot.slane %v528, %v555
        %v557 = vlaneseq
        %v558 = vshrl.u32 %v557, 7
        %v559 = vsub.s32 5, %v558
        %v560 = vrot.slane %v528, %v559
        %v561 = vlaneseq
        %v562 = vshrl.u32 %v561, 7
        %v563 = vsub.s32 6, %v562
        %v564 = vrot.slane %v528, %v563
        %v565 = vlaneseq
        %v566 = vshrl.u32 %v565, 7
        %v567 = vsub.s32 7, %v566
        %v568 = vrot.slane %v528, %v567
        %v569 = vlaneseq
        %v570 = vshrl.u32 %v569, 7
        %v571 = vsub.s32 0, %v570
        %v572 = vrot.slane %v534, %v571
        %v573 = vlaneseq
        %v574 = vshrl.u32 %v573, 7
        %v575 = vsub.s32 1, %v574
        %v576 = vrot.slane %v534, %v575
        %v577 = vcombine.low %v540, %v544
        %v578 = vcombine.low %v548, %v552
        %v579 = vcombine.low %v556, %v560
        %v580 = vcombine.low %v564, %v568
        %v582 = vunpack.c.l.s4 1966171168
        %v583 = vunpack.c.0.s8 %v582
        %v584 = vlaneseq
        %v585 = vshrl.u32 %v584, 7
        %v586 = vsub.s32 %v583, %v585
        %v587 = vrot.slane %v577, %v586
        %v589 = vunpack.c.l.s4 1966171168
        %v590 = vunpack.c.0.s8 %v589
        %v591 = vlaneseq
        %v592 = vshrl.u32 %v591, 7
        %v593 = vsub.s32 %v590, %v592
        %v594 = vrot.slane %v578, %v593
        %v596 = vunpack.c.l.s4 1966171168
        %v597 = vunpack.c.0.s8 %v596
        %v598 = vlaneseq
        %v599 = vshrl.u32 %v598, 7
        %v600 = vsub.s32 %v597, %v599
        %v601 = vrot.slane %v579, %v600
        %v603 = vunpack.c.l.s4 1966171168
        %v604 = vunpack.c.0.s8 %v603
        %v605 = vlaneseq
        %v606 = vshrl.u32 %v605, 7
        %v607 = vsub.s32 %v604, %v606
        %v608 = vrot.slane %v580, %v607
        %v609 = vcombine.low %v587, %v594
        %v610 = vcombine.low %v601, %v608
        %v612 = vunpack.c.l.s4 1966171168
        %v613 = vunpack.c.0.s8 %v612
        %v614 = vlaneseq
        %v615 = vshrl.u32 %v614, 7
        %v616 = vsub.s32 %v613, %v615
        %v617 = vrot.slane %v609, %v616
        %v619 = vunpack.c.l.s4 1966171168
        %v620 = vunpack.c.0.s8 %v619
        %v621 = vlaneseq
        %v622 = vshrl.u32 %v621, 7
        %v623 = vsub.s32 %v620, %v622
        %v624 = vrot.slane %v610, %v623
        %v625 = vcombine.low %v617, %v624
        %v626 = vcombine.low %v572, %v576
        %v628 = vunpack.c.l.s4 1966171168
        %v629 = vunpack.c.0.s8 %v628
        %v630 = vlaneseq
        %v631 = vshrl.u32 %v630, 7
        %v632 = vsub.s32 %v629, %v631
        %v633 = vrot.slane %v626, %v632
        %v635 = vunpack.c.l.s4 1966171168
        %v636 = vunpack.c.0.s8 %v635
        %v637 = vlaneseq
        %v638 = vshrl.u32 %v637, 7
        %v639 = vsub.s32 %v636, %v638
        %v640 = vrot.slane %v633, %v639
        %641 = vset.pattern.permute.xlu0 0
        %642 = vperm.xlu0 %641, %v625
        %v643 = vpop.permute.xlu0 %642
        %644 = vset.pattern.permute.xlu0 0
        %645 = vperm.xlu0 %644, %v640
        %v646 = vpop.permute.xlu0 %645
        %v647 = vlaneseq
        %v648 = vand.u32 %v647, 127
        %v649 = vlaneseq
        %v650 = vshrl.u32 %v649, 7
        %v651 = vsub.s32 %v648, %v650
        %v652 = vrot.slane %v643, %v651
        %v653 = vadd.s32 %v648, 4294967288
        %v654 = vlaneseq
        %v655 = vshrl.u32 %v654, 7
        %v656 = vsub.s32 %v653, %v655
        %v657 = vrot.slane %v646, %v656
        %vm658 = vcmask 130112
        %v659 = vsel %vm658, %v657, %v652
        %v661 = vunpack.c.l.s4 1966171168
        %v662 = vunpack.c.0.s8 %v661
        %v663 = vlaneseq
        %v664 = vshrl.u32 %v663, 7
        %v665 = vsub.s32 %v662, %v664
        %v666 = vrot.slane %v659, %v665
        %v668 = vunpack.c.l.s4 1966171168
        %v669 = vunpack.c.0.s8 %v668
        %v670 = vlaneseq
        %v671 = vshrl.u32 %v670, 7
        %v672 = vsub.s32 %v669, %v671
        %v673 = vrot.slane %v666, %v672
        %v675 = vadd.f32 %v525, %v673
        %vm676 = vcmask 73728
        %677 = vst.msk [vmem:[#allocation4] sm:$0x1] %vm676, %v675
        %v678 = vsel %vm529, %v385, -inf
        %v679 = vmax.f32 %v383, %v678
        %v680 = vrot.slane %v679, 4
        %v681 = vmax.f32 %v679, %v680
        %v682 = vrot.slane %v681, 2
        %v683 = vmax.f32 %v681, %v682
        %v684 = vrot.slane %v683, 1
        %v685 = vmax.f32 %v683, %v684
        %v686 = vsel %vm529, %v386, -inf
        %v687 = vmax.f32 %v384, %v686
        %v688 = vrot.slane %v687, 4
        %v689 = vmax.f32 %v687, %v688
        %v690 = vrot.slane %v689, 2
        %v691 = vmax.f32 %v689, %v690
        %v692 = vrot.slane %v691, 1
        %v693 = vmax.f32 %v691, %v692
        %v694 = vsub.f32 %v383, %v685
        %v695 = vsub.f32 %v384, %v693
        %v696 = vsub.f32 %v385, %v685
        %v697 = vsub.f32 %v386, %v693
        %v698 = vmul.f32 %v694, 1.442695
        %v699 = vpow.pop %v698
        %v700 = vmul.f32 %v695, 1.442695
        %v701 = vpow.pop %v700
        %v702 = vmul.f32 %v696, 1.442695
        %v703 = vpow.pop %v702
        %v704 = vmul.f32 %v697, 1.442695
        %v705 = vpow.pop %v704
        %v706 = vsel %vm529, %v703, 0.0
        %v707 = vadd.f32 %v699, %v706
        %v708 = vrot.slane %v707, 4
        %v709 = vadd.f32 %v707, %v708
        %v710 = vrot.slane %v709, 2
        %v711 = vadd.f32 %v709, %v710
        %v712 = vrot.slane %v711, 1
        %v713 = vadd.f32 %v711, %v712
        %v714 = vsel %vm529, %v705, 0.0
        %v715 = vadd.f32 %v701, %v714
        %v716 = vrot.slane %v715, 4
        %v717 = vadd.f32 %v715, %v716
        %v718 = vrot.slane %v717, 2
        %v719 = vadd.f32 %v717, %v718
        %v720 = vrot.slane %v719, 1
        %v721 = vadd.f32 %v719, %v720
        %v722 = vrcp.pop %v713
        %v723 = vrcp.pop %v721
        %v724 = vmul.f32 %v699, %v722
        %v725 = vmul.f32 %v701, %v723
        %v726 = vmul.f32 %v703, %v722
        %v727 = vmul.f32 %v705, %v723
        %v728 = vmul.f32 %v724, %v389
        %v729 = vmul.f32 %v725, %v390
        %v730 = vmul.f32 %v726, %v391
        %v731 = vmul.f32 %v727, %v392
        %v732 = vadd.f32 %v724, %v389
        %v733 = vadd.f32 %v725, %v390
        %v734 = vadd.f32 %v726, %v391
        %v735 = vadd.f32 %v727, %v392
        %v736 = vld [vmem:[#allocation2] sm:$0x1]
        %v737 = vadd.f32 %v728, %v729
        %738 = vadd.xlane.f32.xlu0 %v737
        %v739 = vpop.xlane.xlu0 %738
        %v740 = vsel %vm529, %v730, 0.0
        %v741 = vsel %vm529, %v731, 0.0
        %v742 = vadd.f32 %v740, %v741
        %743 = vadd.xlane.f32.xlu0 %v742
        %v744 = vpop.xlane.xlu0 %743
        %v747 = vlaneseq
        %v748 = vshrl.u32 %v747, 7
        %v749 = vsub.s32 0, %v748
        %v750 = vrot.slane %v739, %v749
        %v751 = vlaneseq
        %v752 = vshrl.u32 %v751, 7
        %v753 = vsub.s32 1, %v752
        %v754 = vrot.slane %v739, %v753
        %v755 = vlaneseq
        %v756 = vshrl.u32 %v755, 7
        %v757 = vsub.s32 2, %v756
        %v758 = vrot.slane %v739, %v757
        %v759 = vlaneseq
        %v760 = vshrl.u32 %v759, 7
        %v761 = vsub.s32 3, %v760
        %v762 = vrot.slane %v739, %v761
        %v763 = vlaneseq
        %v764 = vshrl.u32 %v763, 7
        %v765 = vsub.s32 4, %v764
        %v766 = vrot.slane %v739, %v765
        %v767 = vlaneseq
        %v768 = vshrl.u32 %v767, 7
        %v769 = vsub.s32 5, %v768
        %v770 = vrot.slane %v739, %v769
        %v771 = vlaneseq
        %v772 = vshrl.u32 %v771, 7
        %v773 = vsub.s32 6, %v772
        %v774 = vrot.slane %v739, %v773
        %v775 = vlaneseq
        %v776 = vshrl.u32 %v775, 7
        %v777 = vsub.s32 7, %v776
        %v778 = vrot.slane %v739, %v777
        %v779 = vlaneseq
        %v780 = vshrl.u32 %v779, 7
        %v781 = vsub.s32 0, %v780
        %v782 = vrot.slane %v744, %v781
        %v783 = vlaneseq
        %v784 = vshrl.u32 %v783, 7
        %v785 = vsub.s32 1, %v784
        %v786 = vrot.slane %v744, %v785
        %v787 = vcombine.low %v750, %v754
        %v788 = vcombine.low %v758, %v762
        %v789 = vcombine.low %v766, %v770
        %v790 = vcombine.low %v774, %v778
        %v792 = vunpack.c.l.s4 1966171168
        %v793 = vunpack.c.0.s8 %v792
        %v794 = vlaneseq
        %v795 = vshrl.u32 %v794, 7
        %v796 = vsub.s32 %v793, %v795
        %v797 = vrot.slane %v787, %v796
        %v799 = vunpack.c.l.s4 1966171168
        %v800 = vunpack.c.0.s8 %v799
        %v801 = vlaneseq
        %v802 = vshrl.u32 %v801, 7
        %v803 = vsub.s32 %v800, %v802
        %v804 = vrot.slane %v788, %v803
        %v806 = vunpack.c.l.s4 1966171168
        %v807 = vunpack.c.0.s8 %v806
        %v808 = vlaneseq
        %v809 = vshrl.u32 %v808, 7
        %v810 = vsub.s32 %v807, %v809
        %v811 = vrot.slane %v789, %v810
        %v813 = vunpack.c.l.s4 1966171168
        %v814 = vunpack.c.0.s8 %v813
        %v815 = vlaneseq
        %v816 = vshrl.u32 %v815, 7
        %v817 = vsub.s32 %v814, %v816
        %v818 = vrot.slane %v790, %v817
        %v819 = vcombine.low %v797, %v804
        %v820 = vcombine.low %v811, %v818
        %v822 = vunpack.c.l.s4 1966171168
        %v823 = vunpack.c.0.s8 %v822
        %v824 = vlaneseq
        %v825 = vshrl.u32 %v824, 7
        %v826 = vsub.s32 %v823, %v825
        %v827 = vrot.slane %v819, %v826
        %v829 = vunpack.c.l.s4 1966171168
        %v830 = vunpack.c.0.s8 %v829
        %v831 = vlaneseq
        %v832 = vshrl.u32 %v831, 7
        %v833 = vsub.s32 %v830, %v832
        %v834 = vrot.slane %v820, %v833
        %v835 = vcombine.low %v827, %v834
        %v836 = vcombine.low %v782, %v786
        %v838 = vunpack.c.l.s4 1966171168
        %v839 = vunpack.c.0.s8 %v838
        %v840 = vlaneseq
        %v841 = vshrl.u32 %v840, 7
        %v842 = vsub.s32 %v839, %v841
        %v843 = vrot.slane %v836, %v842
        %v845 = vunpack.c.l.s4 1966171168
        %v846 = vunpack.c.0.s8 %v845
        %v847 = vlaneseq
        %v848 = vshrl.u32 %v847, 7
        %v849 = vsub.s32 %v846, %v848
        %v850 = vrot.slane %v843, %v849
        %851 = vset.pattern.permute.xlu0 0
        %852 = vperm.xlu0 %851, %v835
        %v853 = vpop.permute.xlu0 %852
        %854 = vset.pattern.permute.xlu0 0
        %855 = vperm.xlu0 %854, %v850
        %v856 = vpop.permute.xlu0 %855
        %v857 = vlaneseq
        %v858 = vshrl.u32 %v857, 7
        %v859 = vsub.s32 %v648, %v858
        %v860 = vrot.slane %v853, %v859
        %v861 = vlaneseq
        %v862 = vshrl.u32 %v861, 7
        %v863 = vsub.s32 %v653, %v862
        %v864 = vrot.slane %v856, %v863
        %v865 = vsel %vm658, %v864, %v860
        %v867 = vunpack.c.l.s4 1966171168
        %v868 = vunpack.c.0.s8 %v867
        %v869 = vlaneseq
        %v870 = vshrl.u32 %v869, 7
        %v871 = vsub.s32 %v868, %v870
        %v872 = vrot.slane %v865, %v871
        %v874 = vunpack.c.l.s4 1966171168
        %v875 = vunpack.c.0.s8 %v874
        %v876 = vlaneseq
        %v877 = vshrl.u32 %v876, 7
        %v878 = vsub.s32 %v875, %v877
        %v879 = vrot.slane %v872, %v878
        %v881 = vadd.f32 %v736, %v879
        %882 = vst.msk [vmem:[#allocation2] sm:$0x1] %vm676, %v881
        %v883 = vld [vmem:[#allocation3] sm:$0x1]
        %v884 = vadd.f32 %v732, %v733
        %885 = vadd.xlane.f32.xlu0 %v884
        %v886 = vpop.xlane.xlu0 %885
        %v887 = vsel %vm529, %v734, 0.0
        %v888 = vsel %vm529, %v735, 0.0
        %v889 = vadd.f32 %v887, %v888
        %890 = vadd.xlane.f32.xlu0 %v889
        %v891 = vpop.xlane.xlu0 %890
        %v894 = vlaneseq
        %v895 = vshrl.u32 %v894, 7
        %v896 = vsub.s32 0, %v895
        %v897 = vrot.slane %v886, %v896
        %v898 = vlaneseq
        %v899 = vshrl.u32 %v898, 7
        %v900 = vsub.s32 1, %v899
        %v901 = vrot.slane %v886, %v900
        %v902 = vlaneseq
        %v903 = vshrl.u32 %v902, 7
        %v904 = vsub.s32 2, %v903
        %v905 = vrot.slane %v886, %v904
        %v906 = vlaneseq
        %v907 = vshrl.u32 %v906, 7
        %v908 = vsub.s32 3, %v907
        %v909 = vrot.slane %v886, %v908
        %v910 = vlaneseq
        %v911 = vshrl.u32 %v910, 7
        %v912 = vsub.s32 4, %v911
        %v913 = vrot.slane %v886, %v912
        %v914 = vlaneseq
        %v915 = vshrl.u32 %v914, 7
        %v916 = vsub.s32 5, %v915
        %v917 = vrot.slane %v886, %v916
        %v918 = vlaneseq
        %v919 = vshrl.u32 %v918, 7
        %v920 = vsub.s32 6, %v919
        %v921 = vrot.slane %v886, %v920
        %v922 = vlaneseq
        %v923 = vshrl.u32 %v922, 7
        %v924 = vsub.s32 7, %v923
        %v925 = vrot.slane %v886, %v924
        %v926 = vlaneseq
        %v927 = vshrl.u32 %v926, 7
        %v928 = vsub.s32 0, %v927
        %v929 = vrot.slane %v891, %v928
        %v930 = vlaneseq
        %v931 = vshrl.u32 %v930, 7
        %v932 = vsub.s32 1, %v931
        %v933 = vrot.slane %v891, %v932
        %v934 = vcombine.low %v897, %v901
        %v935 = vcombine.low %v905, %v909
        %v936 = vcombine.low %v913, %v917
        %v937 = vcombine.low %v921, %v925
        %v939 = vunpack.c.l.s4 1966171168
        %v940 = vunpack.c.0.s8 %v939
        %v941 = vlaneseq
        %v942 = vshrl.u32 %v941, 7
        %v943 = vsub.s32 %v940, %v942
        %v944 = vrot.slane %v934, %v943
        %v946 = vunpack.c.l.s4 1966171168
        %v947 = vunpack.c.0.s8 %v946
        %v948 = vlaneseq
        %v949 = vshrl.u32 %v948, 7
        %v950 = vsub.s32 %v947, %v949
        %v951 = vrot.slane %v935, %v950
        %v953 = vunpack.c.l.s4 1966171168
        %v954 = vunpack.c.0.s8 %v953
        %v955 = vlaneseq
        %v956 = vshrl.u32 %v955, 7
        %v957 = vsub.s32 %v954, %v956
        %v958 = vrot.slane %v936, %v957
        %v960 = vunpack.c.l.s4 1966171168
        %v961 = vunpack.c.0.s8 %v960
        %v962 = vlaneseq
        %v963 = vshrl.u32 %v962, 7
        %v964 = vsub.s32 %v961, %v963
        %v965 = vrot.slane %v937, %v964
        %v966 = vcombine.low %v944, %v951
        %v967 = vcombine.low %v958, %v965
        %v969 = vunpack.c.l.s4 1966171168
        %v970 = vunpack.c.0.s8 %v969
        %v971 = vlaneseq
        %v972 = vshrl.u32 %v971, 7
        %v973 = vsub.s32 %v970, %v972
        %v974 = vrot.slane %v966, %v973
        %v976 = vunpack.c.l.s4 1966171168
        %v977 = vunpack.c.0.s8 %v976
        %v978 = vlaneseq
        %v979 = vshrl.u32 %v978, 7
        %v980 = vsub.s32 %v977, %v979
        %v981 = vrot.slane %v967, %v980
        %v982 = vcombine.low %v974, %v981
        %v983 = vcombine.low %v929, %v933
        %v985 = vunpack.c.l.s4 1966171168
        %v986 = vunpack.c.0.s8 %v985
        %v987 = vlaneseq
        %v988 = vshrl.u32 %v987, 7
        %v989 = vsub.s32 %v986, %v988
        %v990 = vrot.slane %v983, %v989
        %v992 = vunpack.c.l.s4 1966171168
        %v993 = vunpack.c.0.s8 %v992
        %v994 = vlaneseq
        %v995 = vshrl.u32 %v994, 7
        %v996 = vsub.s32 %v993, %v995
        %v997 = vrot.slane %v990, %v996
        %998 = vset.pattern.permute.xlu0 0
        %999 = vperm.xlu0 %998, %v982
        %v1000 = vpop.permute.xlu0 %999
        %1001 = vset.pattern.permute.xlu0 0
        %1002 = vperm.xlu0 %1001, %v997
        %v1003 = vpop.permute.xlu0 %1002
        %v1004 = vlaneseq
        %v1005 = vshrl.u32 %v1004, 7
        %v1006 = vsub.s32 %v648, %v1005
        %v1007 = vrot.slane %v1000, %v1006
        %v1008 = vlaneseq
        %v1009 = vshrl.u32 %v1008, 7
        %v1010 = vsub.s32 %v653, %v1009
        %v1011 = vrot.slane %v1003, %v1010
        %v1012 = vsel %vm658, %v1011, %v1007
        %v1014 = vunpack.c.l.s4 1966171168
        %v1015 = vunpack.c.0.s8 %v1014
        %v1016 = vlaneseq
        %v1017 = vshrl.u32 %v1016, 7
        %v1018 = vsub.s32 %v1015, %v1017
        %v1019 = vrot.slane %v1012, %v1018
        %v1021 = vunpack.c.l.s4 1966171168
        %v1022 = vunpack.c.0.s8 %v1021
        %v1023 = vlaneseq
        %v1024 = vshrl.u32 %v1023, 7
        %v1025 = vsub.s32 %v1022, %v1024
        %v1026 = vrot.slane %v1019, %v1025
        %v1028 = vadd.f32 %v883, %v1026
        %1029 = vst.msk [vmem:[#allocation3] sm:$0x1] %vm676, %v1028
        %v1030 = vld [vmem:[%s366] sm:$0xff]
        %v1031 = vld [vmem:[%s366 + $0x8] sm:$0xff]
        %v1032 = vld [vmem:[%s366 + $0x10] sm:$0x3]
        %v1033 = vld [vmem:[%s366 + $0x18] sm:$0x3]
        %v1034 = vld [vmem:[%s354] sm:$0xff]
        %v1035 = vld [vmem:[%s354 + $0x8] sm:$0xff]
        %v1036 = vld [vmem:[%s354 + $0x10] sm:$0x3]
        %v1037 = vld [vmem:[%s354 + $0x18] sm:$0x3]
        %v1038 = vsel %vm529, %v1032, -inf
        %v1039 = vmax.f32 %v1030, %v1038
        %v1040 = vrot.slane %v1039, 4
        %v1041 = vmax.f32 %v1039, %v1040
        %v1042 = vrot.slane %v1041, 2
        %v1043 = vmax.f32 %v1041, %v1042
        %v1044 = vrot.slane %v1043, 1
        %v1045 = vmax.f32 %v1043, %v1044
        %v1046 = vsel %vm529, %v1033, -inf
        %v1047 = vmax.f32 %v1031, %v1046
        %v1048 = vrot.slane %v1047, 4
        %v1049 = vmax.f32 %v1047, %v1048
        %v1050 = vrot.slane %v1049, 2
        %v1051 = vmax.f32 %v1049, %v1050
        %v1052 = vrot.slane %v1051, 1
        %v1053 = vmax.f32 %v1051, %v1052
        %v1054 = vsub.f32 %v1030, %v1045
        %v1055 = vsub.f32 %v1031, %v1053
        %v1056 = vsub.f32 %v1032, %v1045
        %v1057 = vsub.f32 %v1033, %v1053
        %v1058 = vmul.f32 %v1054, 1.442695
        %v1059 = vpow.pop %v1058
        %v1060 = vmul.f32 %v1055, 1.442695
        %v1061 = vpow.pop %v1060
        %v1062 = vmul.f32 %v1056, 1.442695
        %v1063 = vpow.pop %v1062
        %v1064 = vmul.f32 %v1057, 1.442695
        %v1065 = vpow.pop %v1064
        %v1066 = vsel %vm529, %v1063, 0.0
        %v1067 = vadd.f32 %v1059, %v1066
        %v1068 = vrot.slane %v1067, 4
        %v1069 = vadd.f32 %v1067, %v1068
        %v1070 = vrot.slane %v1069, 2
        %v1071 = vadd.f32 %v1069, %v1070
        %v1072 = vrot.slane %v1071, 1
        %v1073 = vadd.f32 %v1071, %v1072
        %v1074 = vsel %vm529, %v1065, 0.0
        %v1075 = vadd.f32 %v1061, %v1074
        %v1076 = vrot.slane %v1075, 4
        %v1077 = vadd.f32 %v1075, %v1076
        %v1078 = vrot.slane %v1077, 2
        %v1079 = vadd.f32 %v1077, %v1078
        %v1080 = vrot.slane %v1079, 1
        %v1081 = vadd.f32 %v1079, %v1080
        %v1082 = vlog2.pop %v1073
        %v1083 = vmul.f32 %v1082, 0.6931472
        %v1084 = vlog2.pop %v1081
        %v1085 = vmul.f32 %v1084, 0.6931472
        %v1086 = vsub.f32 %v1054, %v1083
        %v1087 = vsub.f32 %v1055, %v1085
        %v1088 = vsub.f32 %v1056, %v1083
        %v1089 = vsub.f32 %v1057, %v1085
        %v1090 = vsel %vm529, %v1036, -inf
        %v1091 = vmax.f32 %v1034, %v1090
        %v1092 = vrot.slane %v1091, 4
        %v1093 = vmax.f32 %v1091, %v1092
        %v1094 = vrot.slane %v1093, 2
        %v1095 = vmax.f32 %v1093, %v1094
        %v1096 = vrot.slane %v1095, 1
        %v1097 = vmax.f32 %v1095, %v1096
        %v1098 = vsel %vm529, %v1037, -inf
        %v1099 = vmax.f32 %v1035, %v1098
        %v1100 = vrot.slane %v1099, 4
        %v1101 = vmax.f32 %v1099, %v1100
        %v1102 = vrot.slane %v1101, 2
        %v1103 = vmax.f32 %v1101, %v1102
        %v1104 = vrot.slane %v1103, 1
        %v1105 = vmax.f32 %v1103, %v1104
        %v1106 = vsub.f32 %v1034, %v1097
        %v1107 = vsub.f32 %v1035, %v1105
        %v1108 = vsub.f32 %v1036, %v1097
        %v1109 = vsub.f32 %v1037, %v1105
        %v1110 = vmul.f32 %v1106, 1.442695
        %v1111 = vpow.pop %v1110
        %v1112 = vmul.f32 %v1107, 1.442695
        %v1113 = vpow.pop %v1112
        %v1114 = vmul.f32 %v1108, 1.442695
        %v1115 = vpow.pop %v1114
        %v1116 = vmul.f32 %v1109, 1.442695
        %v1117 = vpow.pop %v1116
        %v1118 = vsel %vm529, %v1115, 0.0
        %v1119 = vadd.f32 %v1111, %v1118
        %v1120 = vrot.slane %v1119, 4
        %v1121 = vadd.f32 %v1119, %v1120
        %v1122 = vrot.slane %v1121, 2
        %v1123 = vadd.f32 %v1121, %v1122
        %v1124 = vrot.slane %v1123, 1
        %v1125 = vadd.f32 %v1123, %v1124
        %v1126 = vsel %vm529, %v1117, 0.0
        %v1127 = vadd.f32 %v1113, %v1126
        %v1128 = vrot.slane %v1127, 4
        %v1129 = vadd.f32 %v1127, %v1128
        %v1130 = vrot.slane %v1129, 2
        %v1131 = vadd.f32 %v1129, %v1130
        %v1132 = vrot.slane %v1131, 1
        %v1133 = vadd.f32 %v1131, %v1132
        %v1134 = vlog2.pop %v1125
        %v1135 = vmul.f32 %v1134, 0.6931472
        %v1136 = vlog2.pop %v1133
        %v1137 = vmul.f32 %v1136, 0.6931472
        %v1138 = vsub.f32 %v1106, %v1135
        %v1139 = vsub.f32 %v1107, %v1137
        %v1140 = vsub.f32 %v1108, %v1135
        %v1141 = vsub.f32 %v1109, %v1137
        %vm1142 = vcmp.lt.f32.partialorder %v1073, 1.0526316
        %vm1143 = vcmp.lt.f32.partialorder %v1081, 1.0526316
        %v1144 = vsel %vm1142, 1, 0
        %v1145 = vsel %vm1143, 1, 0
        %v1146 = vcvt.s32.f32 %v1144
        %v1147 = vcvt.s32.f32 %v1145
        %v1148 = vrcp.pop %v1073
        %v1149 = vrcp.pop %v1081
        %v1150 = vmul.f32 %v1059, %v1148
        %v1151 = vmul.f32 %v1061, %v1149
        %v1152 = vmul.f32 %v1063, %v1148
        %v1153 = vmul.f32 %v1065, %v1149
        %v1154 = vsub.f32 %v1086, %v1138
        %v1155 = vsub.f32 %v1087, %v1139
        %v1156 = vsub.f32 %v1088, %v1140
        %v1157 = vsub.f32 %v1089, %v1141
        %v1158 = vmul.f32 %v1150, %v1154
        %v1159 = vmul.f32 %v1151, %v1155
        %v1160 = vmul.f32 %v1152, %v1156
        %v1161 = vmul.f32 %v1153, %v1157
        %v1162 = vsel %vm529, %v1160, 0.0
        %v1163 = vadd.f32 %v1158, %v1162
        %v1164 = vrot.slane %v1163, 4
        %v1165 = vadd.f32 %v1163, %v1164
        %v1166 = vrot.slane %v1165, 2
        %v1167 = vadd.f32 %v1165, %v1166
        %v1168 = vrot.slane %v1167, 1
        %v1169 = vadd.f32 %v1167, %v1168
        %v1170 = vsel %vm529, %v1161, 0.0
        %v1171 = vadd.f32 %v1159, %v1170
        %v1172 = vrot.slane %v1171, 4
        %v1173 = vadd.f32 %v1171, %v1172
        %v1174 = vrot.slane %v1173, 2
        %v1175 = vadd.f32 %v1173, %v1174
        %v1176 = vrot.slane %v1175, 1
        %v1177 = vadd.f32 %v1175, %v1176
        %v1178 = vmul.f32 %v1169, %v1146
        %v1179 = vmul.f32 %v1177, %v1147
        %v1180 = vld [vmem:[#allocation5] sm:$0x3]
        %v1183 = vcombine.low %v1178, %v1179
        %v1185 = vunpack.c.l.s4 1966171168
        %v1186 = vunpack.c.0.s8 %v1185
        %v1187 = vlaneseq
        %v1188 = vshrl.u32 %v1187, 7
        %v1189 = vsub.s32 %v1186, %v1188
        %v1190 = vrot.slane %v1183, %v1189
        %v1192 = vunpack.c.l.s4 1966171168
        %v1193 = vunpack.c.0.s8 %v1192
        %v1194 = vlaneseq
        %v1195 = vshrl.u32 %v1194, 7
        %v1196 = vsub.s32 %v1193, %v1195
        %v1197 = vrot.slane %v1190, %v1196
        %v1199 = vadd.f32 %v1180, %v1197
        %v1200 = vlaneseq
        %vm1201 = vcmp.ge.s32.totalorder %v1200, 0
        %vm1202 = vcmp.lt.s32.totalorder %v1200, 256
        %vm1203 = vmand %vm1201, %vm1202
        %1204 = vst.msk [vmem:[#allocation5] sm:$0x3] %vm1203, %v1199
        %v1205 = vld [vmem:[#allocation6] sm:$0x3]
        %v1208 = vcombine.low %v1146, %v1147
        %v1210 = vunpack.c.l.s4 1966171168
        %v1211 = vunpack.c.0.s8 %v1210
        %v1212 = vlaneseq
        %v1213 = vshrl.u32 %v1212, 7
        %v1214 = vsub.s32 %v1211, %v1213
        %v1215 = vrot.slane %v1208, %v1214
        %v1217 = vunpack.c.l.s4 1966171168
        %v1218 = vunpack.c.0.s8 %v1217
        %v1219 = vlaneseq
        %v1220 = vshrl.u32 %v1219, 7
        %v1221 = vsub.s32 %v1218, %v1220
        %v1222 = vrot.slane %v1215, %v1221
        %v1224 = vadd.f32 %v1205, %v1222
        %1225 = vst.msk [vmem:[#allocation6] sm:$0x3] %vm1203, %v1224
        // Predicated region
        $region41: #{tpu_custom_call.1} parent=35 // pred_check
          %p1226 = pneg %p369
        $region42: #{tpu_custom_call.1} parent=35 // pred_check_branch
          %1228 = sbr.rel (%p1226) target = $region44
        $region43: #{tpu_custom_call.1} parent=35 // pred_region
          %v1229 = vld [vmem:[#allocation4] sm:$0x1]
          %v1230 = vsel %vm676, %v1229, 0.0
          %1231 = vadd.xlane.f32.xlu0 %v1230
          %v1232 = vpop.xlane.xlu0 %1231
          %v1233 = vrot.slane %v1232, 4
          %v1234 = vadd.f32 %v1232, %v1233
          %v1235 = vrot.slane %v1234, 2
          %v1236 = vadd.f32 %v1234, %v1235
          %v1237 = vrot.slane %v1236, 1
          %v1238 = vadd.f32 %v1236, %v1237
          %s1239 = vtos %v1238
          %v1240 = vld [vmem:[#allocation5] sm:$0x3]
          %v1242 = vlaneseq
          %v1243 = vshrl.u32 %v1242, 7
          %v1244 = vsub.s32 0, %v1243
          %v1245 = vrot.slane %v1240, %v1244
          %v1246 = vlaneseq
          %v1247 = vshrl.u32 %v1246, 7
          %v1248 = vsub.s32 1, %v1247
          %v1249 = vrot.slane %v1240, %v1248
          %vm1252 = vcmask 1040384
          %v1253 = vsel %vm1252, %v1245, 0.0
          %v1254 = vsel %vm1252, %v1249, 0.0
          %v1255 = vadd.f32 %v1253, %v1254
          %1256 = vadd.xlane.f32.xlu0 %v1255
          %v1257 = vpop.xlane.xlu0 %1256
          %v1258 = vrot.slane %v1257, 4
          %v1259 = vadd.f32 %v1257, %v1258
          %v1260 = vrot.slane %v1259, 2
          %v1261 = vadd.f32 %v1259, %v1260
          %v1262 = vrot.slane %v1261, 1
          %v1263 = vadd.f32 %v1261, %v1262
          %s1264 = vtos %v1263
          %v1265 = vld [vmem:[#allocation6] sm:$0x3]
          %v1267 = vlaneseq
          %v1268 = vshrl.u32 %v1267, 7
          %v1269 = vsub.s32 0, %v1268
          %v1270 = vrot.slane %v1265, %v1269
          %v1271 = vlaneseq
          %v1272 = vshrl.u32 %v1271, 7
          %v1273 = vsub.s32 1, %v1272
          %v1274 = vrot.slane %v1265, %v1273
          %v1277 = vsel %vm1252, %v1270, 0.0
          %v1278 = vsel %vm1252, %v1274, 0.0
          %v1279 = vadd.f32 %v1277, %v1278
          %1280 = vadd.xlane.f32.xlu0 %v1279
          %v1281 = vpop.xlane.xlu0 %1280
          %v1282 = vrot.slane %v1281, 4
          %v1283 = vadd.f32 %v1281, %v1282
          %v1284 = vrot.slane %v1283, 2
          %v1285 = vadd.f32 %v1283, %v1284
          %v1286 = vrot.slane %v1285, 1
          %v1287 = vadd.f32 %v1285, %v1286
          %s1288 = vtos %v1287
          %v1289 = vlaneseq
          %v1290 = vshrl.u32 %v1289, 7
          %vm1291 = vcmp.eq.s32.totalorder %v1290, 0
          %v1292 = vstv %s1239
          %v1293 = vsel %vm1291, %v1292, 0.0
          %vm1294 = vcmp.eq.s32.totalorder %v1290, 3
          %v1295 = vstv %s1264
          %v1296 = vsel %vm1294, %v1295, %v1293
          %vm1297 = vcmp.eq.s32.totalorder %v1290, 4
          %v1298 = vstv %s1288
          %v1299 = vsel %vm1297, %v1298, %v1296
          %1300 = vst [vmem:[%s320] sm:$0xff] %v1299
          %v1301 = vld [vmem:[#allocation2] sm:$0x1]
          %1302 = vst.msk [vmem:[%s320 + $0x1] sm:$0x1] %vm676, %v1301
          %v1303 = vld [vmem:[#allocation3] sm:$0x1]
          %1304 = vst.msk [vmem:[%s320 + $0x2] sm:$0x1] %vm676, %v1303
        $region44: #{tpu_custom_call.1} parent=35 // pred_fallthru
          _
        %s1305 = sand.u32 %s167, 1
        %s1306 = scalar_lea.sflag [#allocation8], %s1305
        %s1307 = sand.u32 %s167, 1
        %s1308 = smul.addr %s1307, 8
        %s1309 = scalar_lea.vmem [#allocation7], %s1308
        // Predicated region
        $region45: #{tpu_custom_call.1} parent=35 // pred_check
          %p1310 = pneg %p177
        $region46: #{tpu_custom_call.1} parent=35 // pred_check_branch
          %1312 = sbr.rel (%p1310) target = $region48
        $region47: #{tpu_custom_call.1} parent=35 // pred_region
          %s1314 = ssub.s32 128, 128
          %1315 = vsyncadd %s1306, %s1314
          %s1316 = smul.addr %s23, 2
          %s1317 = sadd.s32 %s24, %s1316
          %s1318 = smul.addr %s1317, 128
          %s1319 = scalar_lea.hbm %s4, %s1318
          %s1321 = sshll.u32 %s1309, 4
          %s1322 = int_to_ptr.vmem [resolvable:$true] %s1321
          %1324 = dma.vmem_to_hbm [thread:$0]  %s1322, 128, %s1319, %s1306
        $region48: #{tpu_custom_call.1} parent=35 // pred_fallthru
          _
      $region36: #{tpu_custom_call.1} parent=5 // pred_fallthru
        _
      %p1325 = scmp.le.s32.totalorder 2, %s13
      // Predicated region
      $region49: #{tpu_custom_call.1} parent=5 // pred_check
        %p1326 = pneg %p1325
      $region50: #{tpu_custom_call.1} parent=5 // pred_check_branch
        %1328 = sbr.rel (%p1326) target = $region52
      $region51: #{tpu_custom_call.1} parent=5 // pred_region
        %s1329 = ssub.s32 %s13, 2
        // Predicated region
        $region53: #{tpu_custom_call.1} parent=51 // pred_check
          %p1330 = pneg %p183
        $region54: #{tpu_custom_call.1} parent=51 // pred_check_branch
          %1332 = sbr.rel (%p1330) target = $region56
        $region55: #{tpu_custom_call.1} parent=51 // pred_region
          %s1333 = sand.u32 %s168, 1
          %s1334 = scalar_lea.sflag [#allocation8], %s1333
          %s1335 = sand.u32 %s168, 1
          %s1336 = smul.addr %s1335, 8
          %s1337 = scalar_lea.vmem [#allocation7], %s1336
          %1338 = dma.done %s1334, 128
        $region56: #{tpu_custom_call.1} parent=51 // pred_fallthru
          _
      $region52: #{tpu_custom_call.1} parent=5 // pred_fallthru
        _
    $region6: #{tpu_custom_call.1} parent=1 // loop_footer
      %s17 = sadd.s32 1, %s13
    $region7: #{tpu_custom_call.1} parent=1 // loop_footer_branch
      %12 = sbr.rel target = $region3
    $region8: #{tpu_custom_call.1} parent=1 // loop_exit
      _
    %1339 = vsyncpa [#allocation8], 1
    %s1340 = scalar_lea.sflag [#allocation8], 1
    %1341 = vsyncpa %s1340, 1

</llo_original>
